<compile_context>
chip_gen: v7x
topology: tpu7x:2x2x1
jax: 0.10.0
libtpu: 0.0.40
codegen_flags: <defaults>
</compile_context>

<pallas_src>
import jax
import jax.numpy as jnp
import numpy as np
from jax.experimental import pallas as pl
from jax.experimental.pallas import tpu as pltpu

# ----------------------------- model dims -----------------------------------
INPUT_SIZE = 5      # features per timestep (module default)
HIDDEN = 32         # small hidden size (module default is 128; kept small)
NUM_LAYERS = 2
BATCH = 4
SEQ = 8
F_PAD = 8           # pad feature dim 5 -> 8 (zero rows in wih0, result identical)
B_PAD = 8           # pad batch to the sublane count


# ----------------------------- Pallas kernel --------------------------------
def lstm_fc_kernel(x_ref, wih0_ref, b0_ref, wh0_ref, wh1_ref, b1_ref,
                   fcw_ref, fcb_ref, out_ref):
    """Fused 2-layer LSTM over the whole sequence + final Linear.

    x_ref  : (Bp, T*F_PAD) f32, lane slice t*F_PAD:(t+1)*F_PAD = x[:, t, :]
    wih0   : (F_PAD, 4H)  b0 : (1, 4H)   (b0 = b_ih0 + b_hh0, g-cols prescaled x2)
    wh0    : (H, 8H) = [whh0^T | wih1^T] (g-cols of each 4H half prescaled x2)
    wh1    : (H, 4H) = whh1^T            (g-cols prescaled x2)
    b1     : (1, 4H)  (b_ih1 + b_hh1, g-cols prescaled x2)
    fcw    : (1, H)   fcb : (1, 1)
    out_ref: (Bp, 1)
    """
    Bp = out_ref.shape[0]
    H = wh1_ref.shape[0]
    H4 = 4 * H
    F = wih0_ref.shape[0]
    T = x_ref.shape[1] // F

    # Recurrent-path weights: cast once to bf16 -> single-pass MXU matmuls.
    wh0 = wh0_ref[...].astype(jnp.bfloat16)      # (H, 8H)
    wh1 = wh1_ref[...].astype(jnp.bfloat16)      # (H, 4H)
    wih0 = wih0_ref[...]                          # f32 (off the serial path)

    # Hoisted bias broadcasts (JAX does not CSE broadcast_in_dim).
    b0_b = jnp.broadcast_to(b0_ref[...], (Bp, H4))
    b1_b = jnp.broadcast_to(b1_ref[...], (Bp, H4))

    def lstm_gates(pre, c_prev):
        # Single full-width (Bp, 4H) sigmoid; tanh(g) recovered with one fma
        # because the g-gate columns were pre-scaled by 2 at init:
        #   tanh(g) = 2 * sigmoid(2g) - 1.
        sg = jax.nn.sigmoid(pre)
        i = sg[:, 0 * H:1 * H]
        f = sg[:, 1 * H:2 * H]
        g = 2.0 * sg[:, 2 * H:3 * H] - 1.0
        o = sg[:, 3 * H:4 * H]
        c = f * c_prev + i * g
        h = o * jnp.tanh(c)
        return h, c

    zero = jnp.zeros((Bp, H), jnp.float32)
    c0, h1, c1 = zero, zero, zero

    # Prologue: step-0 layer-0 (initial h0 == 0 -> no recurrent matmul needed).
    g0 = jnp.dot(x_ref[:, 0:F], wih0, preferred_element_type=jnp.float32) + b0_b
    h0, c0 = lstm_gates(g0, c0)

    # Fully unrolled, software-pipelined recurrence: layer 0 runs one step ahead
    # of layer 1; the two dots per step are independent (both only need the
    # step-start states), so the serial chain is ONE matmul + ONE gate chain.
    for t in range(T):
        m0 = jnp.dot(h0.astype(jnp.bfloat16), wh0,
                     preferred_element_type=jnp.float32)        # (Bp, 8H)
        m1 = jnp.dot(h1.astype(jnp.bfloat16), wh1,
                     preferred_element_type=jnp.float32)        # (Bp, 4H)

        # ----- layer-1 pre-gates / state update for step t.
        g1 = m0[:, H4:] + m1 + b1_b
        h1, c1 = lstm_gates(g1, c1)

        # ----- layer-0 pre-gates / state update for step t+1 (pipelined ahead).
        if t + 1 < T:
            xw_next = jnp.dot(x_ref[:, (t + 1) * F:(t + 2) * F], wih0,
                              preferred_element_type=jnp.float32) + b0_b
            g0 = m0[:, :H4] + xw_next
            h0, c0 = lstm_gates(g0, c0)

    # Final Linear(H, 1): VPU multiply + lane reduce (no N=1 MXU push/drain).
    out_ref[...] = (jnp.sum(h1 * fcw_ref[...], axis=-1, keepdims=True)
                    + fcb_ref[...])


@jax.jit
def lstm_model_forward(x, params):
    """x: (B, T, INPUT_SIZE) f32 -> logits (B, 1) f32."""
    B, T, F = x.shape
    Bp = ((B + B_PAD - 1) // B_PAD) * B_PAD
    # Minimal layout plumbing: zero-pad batch/features and collapse (T, F) into
    # one lane axis (contiguous reshape, no transpose).  All compute is in-kernel.
    x_p = jnp.pad(x, ((0, Bp - B), (0, 0), (0, F_PAD - F)))      # (Bp, T, F_PAD)
    x_flat = x_p.reshape(Bp, T * F_PAD)                          # (Bp, T*F_PAD)

    vmem = pl.BlockSpec(memory_space=pltpu.MemorySpace.VMEM)
    args = (x_flat, params["wih0"], params["b0"], params["wh0"],
            params["wh1"], params["b1"], params["fcw"], params["fcb"])

    out = pl.pallas_call(
        lstm_fc_kernel,
        out_shape=jax.ShapeDtypeStruct((Bp, 1), jnp.float32),
        in_specs=[vmem] * len(args),
        out_specs=vmem,
    )(*args)
    return out[:B]


# ----------------------------- params (deterministic) -----------------------
def init_params(key):
    """PyTorch-style uniform(-1/sqrt(H), 1/sqrt(H)) init, deterministic."""
    H = HIDDEN
    bound = 1.0 / np.sqrt(H)
    keys = jax.random.split(key, 12)

    def u(k, shape):
        return jax.random.uniform(k, shape, jnp.float32, -bound, bound)

    # layer 0: weight_ih_l0 (4H, F), weight_hh_l0 (4H, H), biases (4H,)
    w_ih0 = u(keys[0], (4 * H, INPUT_SIZE))
    w_hh0 = u(keys[1], (4 * H, H))
    b_ih0 = u(keys[2], (4 * H,))
    b_hh0 = u(keys[3], (4 * H,))
    # layer 1
    w_ih1 = u(keys[4], (4 * H, H))
    w_hh1 = u(keys[5], (4 * H, H))
    b_ih1 = u(keys[6], (4 * H,))
    b_hh1 = u(keys[7], (4 * H,))
    # fc: Linear(H, 1)
    fc_w = jax.random.uniform(keys[8], (1, H), jnp.float32, -bound, bound)
    fc_b = jax.random.uniform(keys[9], (1,), jnp.float32, -bound, bound)

    def scale_g(w):
        # Pre-scale the g-gate columns (2H:3H of a 4H block) by 2, so the kernel
        # can use tanh(g) = 2*sigmoid(2g) - 1 (one EUP pass instead of two).
        return w.at[..., 2 * H:3 * H].multiply(2.0)

    # Layer-0 input weight: transpose to (F, 4H), zero-pad features 5 -> 8.
    wih0_t = jnp.zeros((F_PAD, 4 * H), jnp.float32).at[:INPUT_SIZE, :].set(w_ih0.T)

    # Stacked recurrent weight: [whh0^T | wih1^T]  -> (H, 8H); g-cols of BOTH
    # 4H halves pre-scaled by 2.
    wh0 = jnp.concatenate([w_hh0.T, w_ih1.T], axis=1)
    wh0 = wh0.at[:, 2 * H:3 * H].multiply(2.0)
    wh0 = wh0.at[:, 4 * H + 2 * H:4 * H + 3 * H].multiply(2.0)

    params = {
        "wih0": scale_g(wih0_t),                               # (F_PAD, 4H)
        "b0": scale_g((b_ih0 + b_hh0).reshape(1, 4 * H)),      # (1, 4H)
        "wh0": wh0,                                            # (H, 8H)
        "wh1": scale_g(w_hh1.T),                               # (H, 4H)
        "b1": scale_g((b_ih1 + b_hh1).reshape(1, 4 * H)),      # (1, 4H)
        "fcw": fc_w,                                           # (1, H)
        "fcb": fc_b.reshape(1, 1),                             # (1, 1)
    }
    raw = dict(w_ih0=w_ih0, w_hh0=w_hh0, b_ih0=b_ih0, b_hh0=b_hh0,
               w_ih1=w_ih1, w_hh1=w_hh1, b_ih1=b_ih1, b_hh1=b_hh1,
               fc_w=fc_w, fc_b=fc_b)
    return params, raw


# ----------------------------- pure-JAX reference ----------------------------
def reference_forward(x, raw):
    H = HIDDEN

    def cell(xt, h, c, w_ih, w_hh, b_ih, b_hh):
        gates = xt @ w_ih.T + b_ih + h @ w_hh.T + b_hh
        i = jax.nn.sigmoid(gates[:, 0 * H:1 * H])
        f = jax.nn.sigmoid(gates[:, 1 * H:2 * H])
        g = jnp.tanh(gates[:, 2 * H:3 * H])
        o = jax.nn.sigmoid(gates[:, 3 * H:4 * H])
        c = f * c + i * g
        h = o * jnp.tanh(c)
        return h, c

    B, T, _ = x.shape
    h0 = c0 = h1 = c1 = jnp.zeros((B, H), jnp.float32)
    for t in range(T):
        xt = x[:, t, :]
        h0, c0 = cell(xt, h0, c0, raw["w_ih0"], raw["w_hh0"], raw["b_ih0"], raw["b_hh0"])
        h1, c1 = cell(h0, h1, c1, raw["w_ih1"], raw["w_hh1"], raw["b_ih1"], raw["b_hh1"])
    # TODO(synk): nn.Dropout(0.3) between layers is train-only; eval semantics here.
    return h1 @ raw["fc_w"].T + raw["fc_b"]


# ----------------------------- main ------------------------------------------
if __name__ == "__main__":
    key = jax.random.PRNGKey(0)
    k_x, k_p = jax.random.split(key)
    x = jax.random.normal(k_x, (BATCH, SEQ, INPUT_SIZE), jnp.float32)

    params, raw = init_params(k_p)

    out = jax.block_until_ready(lstm_model_forward(x, params))

    ref = reference_forward(x, raw)
    assert out.shape == (BATCH, 1), out.shape
    # bf16 MXU operands on the recurrent path -> relaxed tolerance (review note).
    np.testing.assert_allclose(np.asarray(out), np.asarray(ref), rtol=2e-2, atol=2e-2)

    print("KERNEL_OK")
</pallas_src>

<mosaic_0001>
module attributes {stable_mosaic.version = 11 : i64} {
  func.func @lstm_fc_kernel(%arg0: memref<8x64xf32, #tpu.memory_space<vmem>>, %arg1: memref<8x128xf32, #tpu.memory_space<vmem>>, %arg2: memref<1x128xf32, #tpu.memory_space<vmem>>, %arg3: memref<32x256xf32, #tpu.memory_space<vmem>>, %arg4: memref<32x128xf32, #tpu.memory_space<vmem>>, %arg5: memref<1x128xf32, #tpu.memory_space<vmem>>, %arg6: memref<1x32xf32, #tpu.memory_space<vmem>>, %arg7: memref<1x1xf32, #tpu.memory_space<vmem>>, %arg8: memref<8x1xf32, #tpu.memory_space<vmem>>) attributes {dimension_semantics = [], scalar_prefetch = 0 : i64, scratch_operands = 0 : i64, tpu.core_type = #tpu.core_type<tc>} {
    %c0 = arith.constant 0 : index
    %c0_0 = arith.constant 0 : index
    %0 = vector.load %arg3[%c0, %c0_0] : memref<32x256xf32, #tpu.memory_space<vmem>>, vector<32x256xf32>
    %1 = arith.truncf %0 : vector<32x256xf32> to vector<32x256xbf16>
    %c0_1 = arith.constant 0 : index
    %c0_2 = arith.constant 0 : index
    %2 = vector.load %arg4[%c0_1, %c0_2] : memref<32x128xf32, #tpu.memory_space<vmem>>, vector<32x128xf32>
    %3 = arith.truncf %2 : vector<32x128xf32> to vector<32x128xbf16>
    %c0_3 = arith.constant 0 : index
    %c0_4 = arith.constant 0 : index
    %4 = vector.load %arg1[%c0_3, %c0_4] : memref<8x128xf32, #tpu.memory_space<vmem>>, vector<8x128xf32>
    %c0_5 = arith.constant 0 : index
    %c0_6 = arith.constant 0 : index
    %5 = vector.load %arg2[%c0_5, %c0_6] : memref<1x128xf32, #tpu.memory_space<vmem>>, vector<1x128xf32>
    %6 = vector.shape_cast %5 : vector<1x128xf32> to vector<1x128xf32>
    %7 = vector.broadcast %6 : vector<1x128xf32> to vector<8x128xf32>
    %c0_7 = arith.constant 0 : index
    %c0_8 = arith.constant 0 : index
    %8 = vector.load %arg5[%c0_7, %c0_8] : memref<1x128xf32, #tpu.memory_space<vmem>>, vector<1x128xf32>
    %9 = vector.shape_cast %8 : vector<1x128xf32> to vector<1x128xf32>
    %10 = vector.broadcast %9 : vector<1x128xf32> to vector<8x128xf32>
    %cst = arith.constant 0.000000e+00 : f32
    %11 = vector.broadcast %cst : f32 to vector<8x32xf32>
    %c0_9 = arith.constant 0 : index
    %c0_10 = arith.constant 0 : index
    %12 = vector.load %arg0[%c0_9, %c0_10] : memref<8x64xf32, #tpu.memory_space<vmem>>, vector<8x8xf32>
    %cst_11 = arith.constant dense<0.000000e+00> : vector<8x128xf32>
    %13 = tpu.matmul %12, %4, %cst_11 {dimension_numbers = #tpu.dot_dimension_numbers<[1], [0], [0], [1], [0, 0, 1, 1], [], []>} : vector<8x8xf32>, vector<8x128xf32>, vector<8x128xf32> -> vector<8x128xf32>
    %14 = arith.addf %13, %7 : vector<8x128xf32>
    %15 = arith.negf %14 : vector<8x128xf32>
    %16 = math.exp %15 : vector<8x128xf32>
    %cst_12 = arith.constant 1.000000e+00 : f32
    %17 = vector.broadcast %cst_12 : f32 to vector<8x128xf32>
    %18 = arith.addf %17, %16 : vector<8x128xf32>
    %19 = arith.divf %17, %18 : vector<8x128xf32>
    %20 = vector.extract_strided_slice %19 {offsets = [0, 0], sizes = [8, 32], strides = [1, 1]} : vector<8x128xf32> to vector<8x32xf32>
    %21 = vector.extract_strided_slice %19 {offsets = [0, 32], sizes = [8, 32], strides = [1, 1]} : vector<8x128xf32> to vector<8x32xf32>
    %22 = vector.extract_strided_slice %19 {offsets = [0, 64], sizes = [8, 32], strides = [1, 1]} : vector<8x128xf32> to vector<8x32xf32>
    %cst_13 = arith.constant 2.000000e+00 : f32
    %23 = vector.broadcast %cst_13 : f32 to vector<8x32xf32>
    %24 = arith.mulf %23, %22 : vector<8x32xf32>
    %cst_14 = arith.constant 1.000000e+00 : f32
    %25 = vector.broadcast %cst_14 : f32 to vector<8x32xf32>
    %26 = arith.subf %24, %25 : vector<8x32xf32>
    %27 = vector.extract_strided_slice %19 {offsets = [0, 96], sizes = [8, 32], strides = [1, 1]} : vector<8x128xf32> to vector<8x32xf32>
    %28 = arith.mulf %21, %11 : vector<8x32xf32>
    %29 = arith.mulf %20, %26 : vector<8x32xf32>
    %30 = arith.addf %28, %29 : vector<8x32xf32>
    %31 = math.tanh %30 : vector<8x32xf32>
    %32 = arith.mulf %27, %31 : vector<8x32xf32>
    %33 = arith.truncf %32 : vector<8x32xf32> to vector<8x32xbf16>
    %cst_15 = arith.constant dense<0.000000e+00> : vector<8x256xf32>
    %34 = tpu.matmul %33, %1, %cst_15 {dimension_numbers = #tpu.dot_dimension_numbers<[1], [0], [0], [1], [0, 0, 1, 1], [], []>} : vector<8x32xbf16>, vector<32x256xbf16>, vector<8x256xf32> -> vector<8x256xf32>
    %35 = arith.truncf %11 : vector<8x32xf32> to vector<8x32xbf16>
    %cst_16 = arith.constant dense<0.000000e+00> : vector<8x128xf32>
    %36 = tpu.matmul %35, %3, %cst_16 {dimension_numbers = #tpu.dot_dimension_numbers<[1], [0], [0], [1], [0, 0, 1, 1], [], []>} : vector<8x32xbf16>, vector<32x128xbf16>, vector<8x128xf32> -> vector<8x128xf32>
    %37 = vector.extract_strided_slice %34 {offsets = [0, 128], sizes = [8, 128], strides = [1, 1]} : vector<8x256xf32> to vector<8x128xf32>
    %38 = arith.addf %37, %36 : vector<8x128xf32>
    %39 = arith.addf %38, %10 : vector<8x128xf32>
    %40 = arith.negf %39 : vector<8x128xf32>
    %41 = math.exp %40 : vector<8x128xf32>
    %cst_17 = arith.constant 1.000000e+00 : f32
    %42 = vector.broadcast %cst_17 : f32 to vector<8x128xf32>
    %43 = arith.addf %42, %41 : vector<8x128xf32>
    %44 = arith.divf %42, %43 : vector<8x128xf32>
    %45 = vector.extract_strided_slice %44 {offsets = [0, 0], sizes = [8, 32], strides = [1, 1]} : vector<8x128xf32> to vector<8x32xf32>
    %46 = vector.extract_strided_slice %44 {offsets = [0, 32], sizes = [8, 32], strides = [1, 1]} : vector<8x128xf32> to vector<8x32xf32>
    %47 = vector.extract_strided_slice %44 {offsets = [0, 64], sizes = [8, 32], strides = [1, 1]} : vector<8x128xf32> to vector<8x32xf32>
    %cst_18 = arith.constant 2.000000e+00 : f32
    %48 = vector.broadcast %cst_18 : f32 to vector<8x32xf32>
    %49 = arith.mulf %48, %47 : vector<8x32xf32>
    %cst_19 = arith.constant 1.000000e+00 : f32
    %50 = vector.broadcast %cst_19 : f32 to vector<8x32xf32>
    %51 = arith.subf %49, %50 : vector<8x32xf32>
    %52 = vector.extract_strided_slice %44 {offsets = [0, 96], sizes = [8, 32], strides = [1, 1]} : vector<8x128xf32> to vector<8x32xf32>
    %53 = arith.mulf %46, %11 : vector<8x32xf32>
    %54 = arith.mulf %45, %51 : vector<8x32xf32>
    %55 = arith.addf %53, %54 : vector<8x32xf32>
    %56 = math.tanh %55 : vector<8x32xf32>
    %57 = arith.mulf %52, %56 : vector<8x32xf32>
    %c0_20 = arith.constant 0 : index
    %c8 = arith.constant 8 : index
    %58 = vector.load %arg0[%c0_20, %c8] : memref<8x64xf32, #tpu.memory_space<vmem>>, vector<8x8xf32>
    %cst_21 = arith.constant dense<0.000000e+00> : vector<8x128xf32>
    %59 = tpu.matmul %58, %4, %cst_21 {dimension_numbers = #tpu.dot_dimension_numbers<[1], [0], [0], [1], [0, 0, 1, 1], [], []>} : vector<8x8xf32>, vector<8x128xf32>, vector<8x128xf32> -> vector<8x128xf32>
    %60 = arith.addf %59, %7 : vector<8x128xf32>
    %61 = vector.extract_strided_slice %34 {offsets = [0, 0], sizes = [8, 128], strides = [1, 1]} : vector<8x256xf32> to vector<8x128xf32>
    %62 = arith.addf %61, %60 : vector<8x128xf32>
    %63 = arith.negf %62 : vector<8x128xf32>
    %64 = math.exp %63 : vector<8x128xf32>
    %cst_22 = arith.constant 1.000000e+00 : f32
    %65 = vector.broadcast %cst_22 : f32 to vector<8x128xf32>
    %66 = arith.addf %65, %64 : vector<8x128xf32>
    %67 = arith.divf %65, %66 : vector<8x128xf32>
    %68 = vector.extract_strided_slice %67 {offsets = [0, 0], sizes = [8, 32], strides = [1, 1]} : vector<8x128xf32> to vector<8x32xf32>
    %69 = vector.extract_strided_slice %67 {offsets = [0, 32], sizes = [8, 32], strides = [1, 1]} : vector<8x128xf32> to vector<8x32xf32>
    %70 = vector.extract_strided_slice %67 {offsets = [0, 64], sizes = [8, 32], strides = [1, 1]} : vector<8x128xf32> to vector<8x32xf32>
    %cst_23 = arith.constant 2.000000e+00 : f32
    %71 = vector.broadcast %cst_23 : f32 to vector<8x32xf32>
    %72 = arith.mulf %71, %70 : vector<8x32xf32>
    %cst_24 = arith.constant 1.000000e+00 : f32
    %73 = vector.broadcast %cst_24 : f32 to vector<8x32xf32>
    %74 = arith.subf %72, %73 : vector<8x32xf32>
    %75 = vector.extract_strided_slice %67 {offsets = [0, 96], sizes = [8, 32], strides = [1, 1]} : vector<8x128xf32> to vector<8x32xf32>
    %76 = arith.mulf %69, %30 : vector<8x32xf32>
    %77 = arith.mulf %68, %74 : vector<8x32xf32>
    %78 = arith.addf %76, %77 : vector<8x32xf32>
    %79 = math.tanh %78 : vector<8x32xf32>
    %80 = arith.mulf %75, %79 : vector<8x32xf32>
    %81 = arith.truncf %80 : vector<8x32xf32> to vector<8x32xbf16>
    %cst_25 = arith.constant dense<0.000000e+00> : vector<8x256xf32>
    %82 = tpu.matmul %81, %1, %cst_25 {dimension_numbers = #tpu.dot_dimension_numbers<[1], [0], [0], [1], [0, 0, 1, 1], [], []>} : vector<8x32xbf16>, vector<32x256xbf16>, vector<8x256xf32> -> vector<8x256xf32>
    %83 = arith.truncf %57 : vector<8x32xf32> to vector<8x32xbf16>
    %cst_26 = arith.constant dense<0.000000e+00> : vector<8x128xf32>
    %84 = tpu.matmul %83, %3, %cst_26 {dimension_numbers = #tpu.dot_dimension_numbers<[1], [0], [0], [1], [0, 0, 1, 1], [], []>} : vector<8x32xbf16>, vector<32x128xbf16>, vector<8x128xf32> -> vector<8x128xf32>
    %85 = vector.extract_strided_slice %82 {offsets = [0, 128], sizes = [8, 128], strides = [1, 1]} : vector<8x256xf32> to vector<8x128xf32>
    %86 = arith.addf %85, %84 : vector<8x128xf32>
    %87 = arith.addf %86, %10 : vector<8x128xf32>
    %88 = arith.negf %87 : vector<8x128xf32>
    %89 = math.exp %88 : vector<8x128xf32>
    %cst_27 = arith.constant 1.000000e+00 : f32
    %90 = vector.broadcast %cst_27 : f32 to vector<8x128xf32>
    %91 = arith.addf %90, %89 : vector<8x128xf32>
    %92 = arith.divf %90, %91 : vector<8x128xf32>
    %93 = vector.extract_strided_slice %92 {offsets = [0, 0], sizes = [8, 32], strides = [1, 1]} : vector<8x128xf32> to vector<8x32xf32>
    %94 = vector.extract_strided_slice %92 {offsets = [0, 32], sizes = [8, 32], strides = [1, 1]} : vector<8x128xf32> to vector<8x32xf32>
    %95 = vector.extract_strided_slice %92 {offsets = [0, 64], sizes = [8, 32], strides = [1, 1]} : vector<8x128xf32> to vector<8x32xf32>
    %cst_28 = arith.constant 2.000000e+00 : f32
    %96 = vector.broadcast %cst_28 : f32 to vector<8x32xf32>
    %97 = arith.mulf %96, %95 : vector<8x32xf32>
    %cst_29 = arith.constant 1.000000e+00 : f32
    %98 = vector.broadcast %cst_29 : f32 to vector<8x32xf32>
    %99 = arith.subf %97, %98 : vector<8x32xf32>
    %100 = vector.extract_strided_slice %92 {offsets = [0, 96], sizes = [8, 32], strides = [1, 1]} : vector<8x128xf32> to vector<8x32xf32>
    %101 = arith.mulf %94, %55 : vector<8x32xf32>
    %102 = arith.mulf %93, %99 : vector<8x32xf32>
    %103 = arith.addf %101, %102 : vector<8x32xf32>
    %104 = math.tanh %103 : vector<8x32xf32>
    %105 = arith.mulf %100, %104 : vector<8x32xf32>
    %c0_30 = arith.constant 0 : index
    %c16 = arith.constant 16 : index
    %106 = vector.load %arg0[%c0_30, %c16] : memref<8x64xf32, #tpu.memory_space<vmem>>, vector<8x8xf32>
    %cst_31 = arith.constant dense<0.000000e+00> : vector<8x128xf32>
    %107 = tpu.matmul %106, %4, %cst_31 {dimension_numbers = #tpu.dot_dimension_numbers<[1], [0], [0], [1], [0, 0, 1, 1], [], []>} : vector<8x8xf32>, vector<8x128xf32>, vector<8x128xf32> -> vector<8x128xf32>
    %108 = arith.addf %107, %7 : vector<8x128xf32>
    %109 = vector.extract_strided_slice %82 {offsets = [0, 0], sizes = [8, 128], strides = [1, 1]} : vector<8x256xf32> to vector<8x128xf32>
    %110 = arith.addf %109, %108 : vector<8x128xf32>
    %111 = arith.negf %110 : vector<8x128xf32>
    %112 = math.exp %111 : vector<8x128xf32>
    %cst_32 = arith.constant 1.000000e+00 : f32
    %113 = vector.broadcast %cst_32 : f32 to vector<8x128xf32>
    %114 = arith.addf %113, %112 : vector<8x128xf32>
    %115 = arith.divf %113, %114 : vector<8x128xf32>
    %116 = vector.extract_strided_slice %115 {offsets = [0, 0], sizes = [8, 32], strides = [1, 1]} : vector<8x128xf32> to vector<8x32xf32>
    %117 = vector.extract_strided_slice %115 {offsets = [0, 32], sizes = [8, 32], strides = [1, 1]} : vector<8x128xf32> to vector<8x32xf32>
    %118 = vector.extract_strided_slice %115 {offsets = [0, 64], sizes = [8, 32], strides = [1, 1]} : vector<8x128xf32> to vector<8x32xf32>
    %cst_33 = arith.constant 2.000000e+00 : f32
    %119 = vector.broadcast %cst_33 : f32 to vector<8x32xf32>
    %120 = arith.mulf %119, %118 : vector<8x32xf32>
    %cst_34 = arith.constant 1.000000e+00 : f32
    %121 = vector.broadcast %cst_34 : f32 to vector<8x32xf32>
    %122 = arith.subf %120, %121 : vector<8x32xf32>
    %123 = vector.extract_strided_slice %115 {offsets = [0, 96], sizes = [8, 32], strides = [1, 1]} : vector<8x128xf32> to vector<8x32xf32>
    %124 = arith.mulf %117, %78 : vector<8x32xf32>
    %125 = arith.mulf %116, %122 : vector<8x32xf32>
    %126 = arith.addf %124, %125 : vector<8x32xf32>
    %127 = math.tanh %126 : vector<8x32xf32>
    %128 = arith.mulf %123, %127 : vector<8x32xf32>
    %129 = arith.truncf %128 : vector<8x32xf32> to vector<8x32xbf16>
    %cst_35 = arith.constant dense<0.000000e+00> : vector<8x256xf32>
    %130 = tpu.matmul %129, %1, %cst_35 {dimension_numbers = #tpu.dot_dimension_numbers<[1], [0], [0], [1], [0, 0, 1, 1], [], []>} : vector<8x32xbf16>, vector<32x256xbf16>, vector<8x256xf32> -> vector<8x256xf32>
    %131 = arith.truncf %105 : vector<8x32xf32> to vector<8x32xbf16>
    %cst_36 = arith.constant dense<0.000000e+00> : vector<8x128xf32>
    %132 = tpu.matmul %131, %3, %cst_36 {dimension_numbers = #tpu.dot_dimension_numbers<[1], [0], [0], [1], [0, 0, 1, 1], [], []>} : vector<8x32xbf16>, vector<32x128xbf16>, vector<8x128xf32> -> vector<8x128xf32>
    %133 = vector.extract_strided_slice %130 {offsets = [0, 128], sizes = [8, 128], strides = [1, 1]} : vector<8x256xf32> to vector<8x128xf32>
    %134 = arith.addf %133, %132 : vector<8x128xf32>
    %135 = arith.addf %134, %10 : vector<8x128xf32>
    %136 = arith.negf %135 : vector<8x128xf32>
    %137 = math.exp %136 : vector<8x128xf32>
    %cst_37 = arith.constant 1.000000e+00 : f32
    %138 = vector.broadcast %cst_37 : f32 to vector<8x128xf32>
    %139 = arith.addf %138, %137 : vector<8x128xf32>
    %140 = arith.divf %138, %139 : vector<8x128xf32>
    %141 = vector.extract_strided_slice %140 {offsets = [0, 0], sizes = [8, 32], strides = [1, 1]} : vector<8x128xf32> to vector<8x32xf32>
    %142 = vector.extract_strided_slice %140 {offsets = [0, 32], sizes = [8, 32], strides = [1, 1]} : vector<8x128xf32> to vector<8x32xf32>
    %143 = vector.extract_strided_slice %140 {offsets = [0, 64], sizes = [8, 32], strides = [1, 1]} : vector<8x128xf32> to vector<8x32xf32>
    %cst_38 = arith.constant 2.000000e+00 : f32
    %144 = vector.broadcast %cst_38 : f32 to vector<8x32xf32>
    %145 = arith.mulf %144, %143 : vector<8x32xf32>
    %cst_39 = arith.constant 1.000000e+00 : f32
    %146 = vector.broadcast %cst_39 : f32 to vector<8x32xf32>
    %147 = arith.subf %145, %146 : vector<8x32xf32>
    %148 = vector.extract_strided_slice %140 {offsets = [0, 96], sizes = [8, 32], strides = [1, 1]} : vector<8x128xf32> to vector<8x32xf32>
    %149 = arith.mulf %142, %103 : vector<8x32xf32>
    %150 = arith.mulf %141, %147 : vector<8x32xf32>
    %151 = arith.addf %149, %150 : vector<8x32xf32>
    %152 = math.tanh %151 : vector<8x32xf32>
    %153 = arith.mulf %148, %152 : vector<8x32xf32>
    %c0_40 = arith.constant 0 : index
    %c24 = arith.constant 24 : index
    %154 = vector.load %arg0[%c0_40, %c24] : memref<8x64xf32, #tpu.memory_space<vmem>>, vector<8x8xf32>
    %cst_41 = arith.constant dense<0.000000e+00> : vector<8x128xf32>
    %155 = tpu.matmul %154, %4, %cst_41 {dimension_numbers = #tpu.dot_dimension_numbers<[1], [0], [0], [1], [0, 0, 1, 1], [], []>} : vector<8x8xf32>, vector<8x128xf32>, vector<8x128xf32> -> vector<8x128xf32>
    %156 = arith.addf %155, %7 : vector<8x128xf32>
    %157 = vector.extract_strided_slice %130 {offsets = [0, 0], sizes = [8, 128], strides = [1, 1]} : vector<8x256xf32> to vector<8x128xf32>
    %158 = arith.addf %157, %156 : vector<8x128xf32>
    %159 = arith.negf %158 : vector<8x128xf32>
    %160 = math.exp %159 : vector<8x128xf32>
    %cst_42 = arith.constant 1.000000e+00 : f32
    %161 = vector.broadcast %cst_42 : f32 to vector<8x128xf32>
    %162 = arith.addf %161, %160 : vector<8x128xf32>
    %163 = arith.divf %161, %162 : vector<8x128xf32>
    %164 = vector.extract_strided_slice %163 {offsets = [0, 0], sizes = [8, 32], strides = [1, 1]} : vector<8x128xf32> to vector<8x32xf32>
    %165 = vector.extract_strided_slice %163 {offsets = [0, 32], sizes = [8, 32], strides = [1, 1]} : vector<8x128xf32> to vector<8x32xf32>
    %166 = vector.extract_strided_slice %163 {offsets = [0, 64], sizes = [8, 32], strides = [1, 1]} : vector<8x128xf32> to vector<8x32xf32>
    %cst_43 = arith.constant 2.000000e+00 : f32
    %167 = vector.broadcast %cst_43 : f32 to vector<8x32xf32>
    %168 = arith.mulf %167, %166 : vector<8x32xf32>
    %cst_44 = arith.constant 1.000000e+00 : f32
    %169 = vector.broadcast %cst_44 : f32 to vector<8x32xf32>
    %170 = arith.subf %168, %169 : vector<8x32xf32>
    %171 = vector.extract_strided_slice %163 {offsets = [0, 96], sizes = [8, 32], strides = [1, 1]} : vector<8x128xf32> to vector<8x32xf32>
    %172 = arith.mulf %165, %126 : vector<8x32xf32>
    %173 = arith.mulf %164, %170 : vector<8x32xf32>
    %174 = arith.addf %172, %173 : vector<8x32xf32>
    %175 = math.tanh %174 : vector<8x32xf32>
    %176 = arith.mulf %171, %175 : vector<8x32xf32>
    %177 = arith.truncf %176 : vector<8x32xf32> to vector<8x32xbf16>
    %cst_45 = arith.constant dense<0.000000e+00> : vector<8x256xf32>
    %178 = tpu.matmul %177, %1, %cst_45 {dimension_numbers = #tpu.dot_dimension_numbers<[1], [0], [0], [1], [0, 0, 1, 1], [], []>} : vector<8x32xbf16>, vector<32x256xbf16>, vector<8x256xf32> -> vector<8x256xf32>
    %179 = arith.truncf %153 : vector<8x32xf32> to vector<8x32xbf16>
    %cst_46 = arith.constant dense<0.000000e+00> : vector<8x128xf32>
    %180 = tpu.matmul %179, %3, %cst_46 {dimension_numbers = #tpu.dot_dimension_numbers<[1], [0], [0], [1], [0, 0, 1, 1], [], []>} : vector<8x32xbf16>, vector<32x128xbf16>, vector<8x128xf32> -> vector<8x128xf32>
    %181 = vector.extract_strided_slice %178 {offsets = [0, 128], sizes = [8, 128], strides = [1, 1]} : vector<8x256xf32> to vector<8x128xf32>
    %182 = arith.addf %181, %180 : vector<8x128xf32>
    %183 = arith.addf %182, %10 : vector<8x128xf32>
    %184 = arith.negf %183 : vector<8x128xf32>
    %185 = math.exp %184 : vector<8x128xf32>
    %cst_47 = arith.constant 1.000000e+00 : f32
    %186 = vector.broadcast %cst_47 : f32 to vector<8x128xf32>
    %187 = arith.addf %186, %185 : vector<8x128xf32>
    %188 = arith.divf %186, %187 : vector<8x128xf32>
    %189 = vector.extract_strided_slice %188 {offsets = [0, 0], sizes = [8, 32], strides = [1, 1]} : vector<8x128xf32> to vector<8x32xf32>
    %190 = vector.extract_strided_slice %188 {offsets = [0, 32], sizes = [8, 32], strides = [1, 1]} : vector<8x128xf32> to vector<8x32xf32>
    %191 = vector.extract_strided_slice %188 {offsets = [0, 64], sizes = [8, 32], strides = [1, 1]} : vector<8x128xf32> to vector<8x32xf32>
    %cst_48 = arith.constant 2.000000e+00 : f32
    %192 = vector.broadcast %cst_48 : f32 to vector<8x32xf32>
    %193 = arith.mulf %192, %191 : vector<8x32xf32>
    %cst_49 = arith.constant 1.000000e+00 : f32
    %194 = vector.broadcast %cst_49 : f32 to vector<8x32xf32>
    %195 = arith.subf %193, %194 : vector<8x32xf32>
    %196 = vector.extract_strided_slice %188 {offsets = [0, 96], sizes = [8, 32], strides = [1, 1]} : vector<8x128xf32> to vector<8x32xf32>
    %197 = arith.mulf %190, %151 : vector<8x32xf32>
    %198 = arith.mulf %189, %195 : vector<8x32xf32>
    %199 = arith.addf %197, %198 : vector<8x32xf32>
    %200 = math.tanh %199 : vector<8x32xf32>
    %201 = arith.mulf %196, %200 : vector<8x32xf32>
    %c0_50 = arith.constant 0 : index
    %c32 = arith.constant 32 : index
    %202 = vector.load %arg0[%c0_50, %c32] : memref<8x64xf32, #tpu.memory_space<vmem>>, vector<8x8xf32>
    %cst_51 = arith.constant dense<0.000000e+00> : vector<8x128xf32>
    %203 = tpu.matmul %202, %4, %cst_51 {dimension_numbers = #tpu.dot_dimension_numbers<[1], [0], [0], [1], [0, 0, 1, 1], [], []>} : vector<8x8xf32>, vector<8x128xf32>, vector<8x128xf32> -> vector<8x128xf32>
    %204 = arith.addf %203, %7 : vector<8x128xf32>
    %205 = vector.extract_strided_slice %178 {offsets = [0, 0], sizes = [8, 128], strides = [1, 1]} : vector<8x256xf32> to vector<8x128xf32>
    %206 = arith.addf %205, %204 : vector<8x128xf32>
    %207 = arith.negf %206 : vector<8x128xf32>
    %208 = math.exp %207 : vector<8x128xf32>
    %cst_52 = arith.constant 1.000000e+00 : f32
    %209 = vector.broadcast %cst_52 : f32 to vector<8x128xf32>
    %210 = arith.addf %209, %208 : vector<8x128xf32>
    %211 = arith.divf %209, %210 : vector<8x128xf32>
    %212 = vector.extract_strided_slice %211 {offsets = [0, 0], sizes = [8, 32], strides = [1, 1]} : vector<8x128xf32> to vector<8x32xf32>
    %213 = vector.extract_strided_slice %211 {offsets = [0, 32], sizes = [8, 32], strides = [1, 1]} : vector<8x128xf32> to vector<8x32xf32>
    %214 = vector.extract_strided_slice %211 {offsets = [0, 64], sizes = [8, 32], strides = [1, 1]} : vector<8x128xf32> to vector<8x32xf32>
    %cst_53 = arith.constant 2.000000e+00 : f32
    %215 = vector.broadcast %cst_53 : f32 to vector<8x32xf32>
    %216 = arith.mulf %215, %214 : vector<8x32xf32>
    %cst_54 = arith.constant 1.000000e+00 : f32
    %217 = vector.broadcast %cst_54 : f32 to vector<8x32xf32>
    %218 = arith.subf %216, %217 : vector<8x32xf32>
    %219 = vector.extract_strided_slice %211 {offsets = [0, 96], sizes = [8, 32], strides = [1, 1]} : vector<8x128xf32> to vector<8x32xf32>
    %220 = arith.mulf %213, %174 : vector<8x32xf32>
    %221 = arith.mulf %212, %218 : vector<8x32xf32>
    %222 = arith.addf %220, %221 : vector<8x32xf32>
    %223 = math.tanh %222 : vector<8x32xf32>
    %224 = arith.mulf %219, %223 : vector<8x32xf32>
    %225 = arith.truncf %224 : vector<8x32xf32> to vector<8x32xbf16>
    %cst_55 = arith.constant dense<0.000000e+00> : vector<8x256xf32>
    %226 = tpu.matmul %225, %1, %cst_55 {dimension_numbers = #tpu.dot_dimension_numbers<[1], [0], [0], [1], [0, 0, 1, 1], [], []>} : vector<8x32xbf16>, vector<32x256xbf16>, vector<8x256xf32> -> vector<8x256xf32>
    %227 = arith.truncf %201 : vector<8x32xf32> to vector<8x32xbf16>
    %cst_56 = arith.constant dense<0.000000e+00> : vector<8x128xf32>
    %228 = tpu.matmul %227, %3, %cst_56 {dimension_numbers = #tpu.dot_dimension_numbers<[1], [0], [0], [1], [0, 0, 1, 1], [], []>} : vector<8x32xbf16>, vector<32x128xbf16>, vector<8x128xf32> -> vector<8x128xf32>
    %229 = vector.extract_strided_slice %226 {offsets = [0, 128], sizes = [8, 128], strides = [1, 1]} : vector<8x256xf32> to vector<8x128xf32>
    %230 = arith.addf %229, %228 : vector<8x128xf32>
    %231 = arith.addf %230, %10 : vector<8x128xf32>
    %232 = arith.negf %231 : vector<8x128xf32>
    %233 = math.exp %232 : vector<8x128xf32>
    %cst_57 = arith.constant 1.000000e+00 : f32
    %234 = vector.broadcast %cst_57 : f32 to vector<8x128xf32>
    %235 = arith.addf %234, %233 : vector<8x128xf32>
    %236 = arith.divf %234, %235 : vector<8x128xf32>
    %237 = vector.extract_strided_slice %236 {offsets = [0, 0], sizes = [8, 32], strides = [1, 1]} : vector<8x128xf32> to vector<8x32xf32>
    %238 = vector.extract_strided_slice %236 {offsets = [0, 32], sizes = [8, 32], strides = [1, 1]} : vector<8x128xf32> to vector<8x32xf32>
    %239 = vector.extract_strided_slice %236 {offsets = [0, 64], sizes = [8, 32], strides = [1, 1]} : vector<8x128xf32> to vector<8x32xf32>
    %cst_58 = arith.constant 2.000000e+00 : f32
    %240 = vector.broadcast %cst_58 : f32 to vector<8x32xf32>
    %241 = arith.mulf %240, %239 : vector<8x32xf32>
    %cst_59 = arith.constant 1.000000e+00 : f32
    %242 = vector.broadcast %cst_59 : f32 to vector<8x32xf32>
    %243 = arith.subf %241, %242 : vector<8x32xf32>
    %244 = vector.extract_strided_slice %236 {offsets = [0, 96], sizes = [8, 32], strides = [1, 1]} : vector<8x128xf32> to vector<8x32xf32>
    %245 = arith.mulf %238, %199 : vector<8x32xf32>
    %246 = arith.mulf %237, %243 : vector<8x32xf32>
    %247 = arith.addf %245, %246 : vector<8x32xf32>
    %248 = math.tanh %247 : vector<8x32xf32>
    %249 = arith.mulf %244, %248 : vector<8x32xf32>
    %c0_60 = arith.constant 0 : index
    %c40 = arith.constant 40 : index
    %250 = vector.load %arg0[%c0_60, %c40] : memref<8x64xf32, #tpu.memory_space<vmem>>, vector<8x8xf32>
    %cst_61 = arith.constant dense<0.000000e+00> : vector<8x128xf32>
    %251 = tpu.matmul %250, %4, %cst_61 {dimension_numbers = #tpu.dot_dimension_numbers<[1], [0], [0], [1], [0, 0, 1, 1], [], []>} : vector<8x8xf32>, vector<8x128xf32>, vector<8x128xf32> -> vector<8x128xf32>
    %252 = arith.addf %251, %7 : vector<8x128xf32>
    %253 = vector.extract_strided_slice %226 {offsets = [0, 0], sizes = [8, 128], strides = [1, 1]} : vector<8x256xf32> to vector<8x128xf32>
    %254 = arith.addf %253, %252 : vector<8x128xf32>
    %255 = arith.negf %254 : vector<8x128xf32>
    %256 = math.exp %255 : vector<8x128xf32>
    %cst_62 = arith.constant 1.000000e+00 : f32
    %257 = vector.broadcast %cst_62 : f32 to vector<8x128xf32>
    %258 = arith.addf %257, %256 : vector<8x128xf32>
    %259 = arith.divf %257, %258 : vector<8x128xf32>
    %260 = vector.extract_strided_slice %259 {offsets = [0, 0], sizes = [8, 32], strides = [1, 1]} : vector<8x128xf32> to vector<8x32xf32>
    %261 = vector.extract_strided_slice %259 {offsets = [0, 32], sizes = [8, 32], strides = [1, 1]} : vector<8x128xf32> to vector<8x32xf32>
    %262 = vector.extract_strided_slice %259 {offsets = [0, 64], sizes = [8, 32], strides = [1, 1]} : vector<8x128xf32> to vector<8x32xf32>
    %cst_63 = arith.constant 2.000000e+00 : f32
    %263 = vector.broadcast %cst_63 : f32 to vector<8x32xf32>
    %264 = arith.mulf %263, %262 : vector<8x32xf32>
    %cst_64 = arith.constant 1.000000e+00 : f32
    %265 = vector.broadcast %cst_64 : f32 to vector<8x32xf32>
    %266 = arith.subf %264, %265 : vector<8x32xf32>
    %267 = vector.extract_strided_slice %259 {offsets = [0, 96], sizes = [8, 32], strides = [1, 1]} : vector<8x128xf32> to vector<8x32xf32>
    %268 = arith.mulf %261, %222 : vector<8x32xf32>
    %269 = arith.mulf %260, %266 : vector<8x32xf32>
    %270 = arith.addf %268, %269 : vector<8x32xf32>
    %271 = math.tanh %270 : vector<8x32xf32>
    %272 = arith.mulf %267, %271 : vector<8x32xf32>
    %273 = arith.truncf %272 : vector<8x32xf32> to vector<8x32xbf16>
    %cst_65 = arith.constant dense<0.000000e+00> : vector<8x256xf32>
    %274 = tpu.matmul %273, %1, %cst_65 {dimension_numbers = #tpu.dot_dimension_numbers<[1], [0], [0], [1], [0, 0, 1, 1], [], []>} : vector<8x32xbf16>, vector<32x256xbf16>, vector<8x256xf32> -> vector<8x256xf32>
    %275 = arith.truncf %249 : vector<8x32xf32> to vector<8x32xbf16>
    %cst_66 = arith.constant dense<0.000000e+00> : vector<8x128xf32>
    %276 = tpu.matmul %275, %3, %cst_66 {dimension_numbers = #tpu.dot_dimension_numbers<[1], [0], [0], [1], [0, 0, 1, 1], [], []>} : vector<8x32xbf16>, vector<32x128xbf16>, vector<8x128xf32> -> vector<8x128xf32>
    %277 = vector.extract_strided_slice %274 {offsets = [0, 128], sizes = [8, 128], strides = [1, 1]} : vector<8x256xf32> to vector<8x128xf32>
    %278 = arith.addf %277, %276 : vector<8x128xf32>
    %279 = arith.addf %278, %10 : vector<8x128xf32>
    %280 = arith.negf %279 : vector<8x128xf32>
    %281 = math.exp %280 : vector<8x128xf32>
    %cst_67 = arith.constant 1.000000e+00 : f32
    %282 = vector.broadcast %cst_67 : f32 to vector<8x128xf32>
    %283 = arith.addf %282, %281 : vector<8x128xf32>
    %284 = arith.divf %282, %283 : vector<8x128xf32>
    %285 = vector.extract_strided_slice %284 {offsets = [0, 0], sizes = [8, 32], strides = [1, 1]} : vector<8x128xf32> to vector<8x32xf32>
    %286 = vector.extract_strided_slice %284 {offsets = [0, 32], sizes = [8, 32], strides = [1, 1]} : vector<8x128xf32> to vector<8x32xf32>
    %287 = vector.extract_strided_slice %284 {offsets = [0, 64], sizes = [8, 32], strides = [1, 1]} : vector<8x128xf32> to vector<8x32xf32>
    %cst_68 = arith.constant 2.000000e+00 : f32
    %288 = vector.broadcast %cst_68 : f32 to vector<8x32xf32>
    %289 = arith.mulf %288, %287 : vector<8x32xf32>
    %cst_69 = arith.constant 1.000000e+00 : f32
    %290 = vector.broadcast %cst_69 : f32 to vector<8x32xf32>
    %291 = arith.subf %289, %290 : vector<8x32xf32>
    %292 = vector.extract_strided_slice %284 {offsets = [0, 96], sizes = [8, 32], strides = [1, 1]} : vector<8x128xf32> to vector<8x32xf32>
    %293 = arith.mulf %286, %247 : vector<8x32xf32>
    %294 = arith.mulf %285, %291 : vector<8x32xf32>
    %295 = arith.addf %293, %294 : vector<8x32xf32>
    %296 = math.tanh %295 : vector<8x32xf32>
    %297 = arith.mulf %292, %296 : vector<8x32xf32>
    %c0_70 = arith.constant 0 : index
    %c48 = arith.constant 48 : index
    %298 = vector.load %arg0[%c0_70, %c48] : memref<8x64xf32, #tpu.memory_space<vmem>>, vector<8x8xf32>
    %cst_71 = arith.constant dense<0.000000e+00> : vector<8x128xf32>
    %299 = tpu.matmul %298, %4, %cst_71 {dimension_numbers = #tpu.dot_dimension_numbers<[1], [0], [0], [1], [0, 0, 1, 1], [], []>} : vector<8x8xf32>, vector<8x128xf32>, vector<8x128xf32> -> vector<8x128xf32>
    %300 = arith.addf %299, %7 : vector<8x128xf32>
    %301 = vector.extract_strided_slice %274 {offsets = [0, 0], sizes = [8, 128], strides = [1, 1]} : vector<8x256xf32> to vector<8x128xf32>
    %302 = arith.addf %301, %300 : vector<8x128xf32>
    %303 = arith.negf %302 : vector<8x128xf32>
    %304 = math.exp %303 : vector<8x128xf32>
    %cst_72 = arith.constant 1.000000e+00 : f32
    %305 = vector.broadcast %cst_72 : f32 to vector<8x128xf32>
    %306 = arith.addf %305, %304 : vector<8x128xf32>
    %307 = arith.divf %305, %306 : vector<8x128xf32>
    %308 = vector.extract_strided_slice %307 {offsets = [0, 0], sizes = [8, 32], strides = [1, 1]} : vector<8x128xf32> to vector<8x32xf32>
    %309 = vector.extract_strided_slice %307 {offsets = [0, 32], sizes = [8, 32], strides = [1, 1]} : vector<8x128xf32> to vector<8x32xf32>
    %310 = vector.extract_strided_slice %307 {offsets = [0, 64], sizes = [8, 32], strides = [1, 1]} : vector<8x128xf32> to vector<8x32xf32>
    %cst_73 = arith.constant 2.000000e+00 : f32
    %311 = vector.broadcast %cst_73 : f32 to vector<8x32xf32>
    %312 = arith.mulf %311, %310 : vector<8x32xf32>
    %cst_74 = arith.constant 1.000000e+00 : f32
    %313 = vector.broadcast %cst_74 : f32 to vector<8x32xf32>
    %314 = arith.subf %312, %313 : vector<8x32xf32>
    %315 = vector.extract_strided_slice %307 {offsets = [0, 96], sizes = [8, 32], strides = [1, 1]} : vector<8x128xf32> to vector<8x32xf32>
    %316 = arith.mulf %309, %270 : vector<8x32xf32>
    %317 = arith.mulf %308, %314 : vector<8x32xf32>
    %318 = arith.addf %316, %317 : vector<8x32xf32>
    %319 = math.tanh %318 : vector<8x32xf32>
    %320 = arith.mulf %315, %319 : vector<8x32xf32>
    %321 = arith.truncf %320 : vector<8x32xf32> to vector<8x32xbf16>
    %cst_75 = arith.constant dense<0.000000e+00> : vector<8x256xf32>
    %322 = tpu.matmul %321, %1, %cst_75 {dimension_numbers = #tpu.dot_dimension_numbers<[1], [0], [0], [1], [0, 0, 1, 1], [], []>} : vector<8x32xbf16>, vector<32x256xbf16>, vector<8x256xf32> -> vector<8x256xf32>
    %323 = arith.truncf %297 : vector<8x32xf32> to vector<8x32xbf16>
    %cst_76 = arith.constant dense<0.000000e+00> : vector<8x128xf32>
    %324 = tpu.matmul %323, %3, %cst_76 {dimension_numbers = #tpu.dot_dimension_numbers<[1], [0], [0], [1], [0, 0, 1, 1], [], []>} : vector<8x32xbf16>, vector<32x128xbf16>, vector<8x128xf32> -> vector<8x128xf32>
    %325 = vector.extract_strided_slice %322 {offsets = [0, 128], sizes = [8, 128], strides = [1, 1]} : vector<8x256xf32> to vector<8x128xf32>
    %326 = arith.addf %325, %324 : vector<8x128xf32>
    %327 = arith.addf %326, %10 : vector<8x128xf32>
    %328 = arith.negf %327 : vector<8x128xf32>
    %329 = math.exp %328 : vector<8x128xf32>
    %cst_77 = arith.constant 1.000000e+00 : f32
    %330 = vector.broadcast %cst_77 : f32 to vector<8x128xf32>
    %331 = arith.addf %330, %329 : vector<8x128xf32>
    %332 = arith.divf %330, %331 : vector<8x128xf32>
    %333 = vector.extract_strided_slice %332 {offsets = [0, 0], sizes = [8, 32], strides = [1, 1]} : vector<8x128xf32> to vector<8x32xf32>
    %334 = vector.extract_strided_slice %332 {offsets = [0, 32], sizes = [8, 32], strides = [1, 1]} : vector<8x128xf32> to vector<8x32xf32>
    %335 = vector.extract_strided_slice %332 {offsets = [0, 64], sizes = [8, 32], strides = [1, 1]} : vector<8x128xf32> to vector<8x32xf32>
    %cst_78 = arith.constant 2.000000e+00 : f32
    %336 = vector.broadcast %cst_78 : f32 to vector<8x32xf32>
    %337 = arith.mulf %336, %335 : vector<8x32xf32>
    %cst_79 = arith.constant 1.000000e+00 : f32
    %338 = vector.broadcast %cst_79 : f32 to vector<8x32xf32>
    %339 = arith.subf %337, %338 : vector<8x32xf32>
    %340 = vector.extract_strided_slice %332 {offsets = [0, 96], sizes = [8, 32], strides = [1, 1]} : vector<8x128xf32> to vector<8x32xf32>
    %341 = arith.mulf %334, %295 : vector<8x32xf32>
    %342 = arith.mulf %333, %339 : vector<8x32xf32>
    %343 = arith.addf %341, %342 : vector<8x32xf32>
    %344 = math.tanh %343 : vector<8x32xf32>
    %345 = arith.mulf %340, %344 : vector<8x32xf32>
    %c0_80 = arith.constant 0 : index
    %c56 = arith.constant 56 : index
    %346 = vector.load %arg0[%c0_80, %c56] : memref<8x64xf32, #tpu.memory_space<vmem>>, vector<8x8xf32>
    %cst_81 = arith.constant dense<0.000000e+00> : vector<8x128xf32>
    %347 = tpu.matmul %346, %4, %cst_81 {dimension_numbers = #tpu.dot_dimension_numbers<[1], [0], [0], [1], [0, 0, 1, 1], [], []>} : vector<8x8xf32>, vector<8x128xf32>, vector<8x128xf32> -> vector<8x128xf32>
    %348 = arith.addf %347, %7 : vector<8x128xf32>
    %349 = vector.extract_strided_slice %322 {offsets = [0, 0], sizes = [8, 128], strides = [1, 1]} : vector<8x256xf32> to vector<8x128xf32>
    %350 = arith.addf %349, %348 : vector<8x128xf32>
    %351 = arith.negf %350 : vector<8x128xf32>
    %352 = math.exp %351 : vector<8x128xf32>
    %cst_82 = arith.constant 1.000000e+00 : f32
    %353 = vector.broadcast %cst_82 : f32 to vector<8x128xf32>
    %354 = arith.addf %353, %352 : vector<8x128xf32>
    %355 = arith.divf %353, %354 : vector<8x128xf32>
    %356 = vector.extract_strided_slice %355 {offsets = [0, 0], sizes = [8, 32], strides = [1, 1]} : vector<8x128xf32> to vector<8x32xf32>
    %357 = vector.extract_strided_slice %355 {offsets = [0, 32], sizes = [8, 32], strides = [1, 1]} : vector<8x128xf32> to vector<8x32xf32>
    %358 = vector.extract_strided_slice %355 {offsets = [0, 64], sizes = [8, 32], strides = [1, 1]} : vector<8x128xf32> to vector<8x32xf32>
    %cst_83 = arith.constant 2.000000e+00 : f32
    %359 = vector.broadcast %cst_83 : f32 to vector<8x32xf32>
    %360 = arith.mulf %359, %358 : vector<8x32xf32>
    %cst_84 = arith.constant 1.000000e+00 : f32
    %361 = vector.broadcast %cst_84 : f32 to vector<8x32xf32>
    %362 = arith.subf %360, %361 : vector<8x32xf32>
    %363 = vector.extract_strided_slice %355 {offsets = [0, 96], sizes = [8, 32], strides = [1, 1]} : vector<8x128xf32> to vector<8x32xf32>
    %364 = arith.mulf %357, %318 : vector<8x32xf32>
    %365 = arith.mulf %356, %362 : vector<8x32xf32>
    %366 = arith.addf %364, %365 : vector<8x32xf32>
    %367 = math.tanh %366 : vector<8x32xf32>
    %368 = arith.mulf %363, %367 : vector<8x32xf32>
    %369 = arith.truncf %368 : vector<8x32xf32> to vector<8x32xbf16>
    %cst_85 = arith.constant dense<0.000000e+00> : vector<8x256xf32>
    %370 = tpu.matmul %369, %1, %cst_85 {dimension_numbers = #tpu.dot_dimension_numbers<[1], [0], [0], [1], [0, 0, 1, 1], [], []>} : vector<8x32xbf16>, vector<32x256xbf16>, vector<8x256xf32> -> vector<8x256xf32>
    %371 = arith.truncf %345 : vector<8x32xf32> to vector<8x32xbf16>
    %cst_86 = arith.constant dense<0.000000e+00> : vector<8x128xf32>
    %372 = tpu.matmul %371, %3, %cst_86 {dimension_numbers = #tpu.dot_dimension_numbers<[1], [0], [0], [1], [0, 0, 1, 1], [], []>} : vector<8x32xbf16>, vector<32x128xbf16>, vector<8x128xf32> -> vector<8x128xf32>
    %373 = vector.extract_strided_slice %370 {offsets = [0, 128], sizes = [8, 128], strides = [1, 1]} : vector<8x256xf32> to vector<8x128xf32>
    %374 = arith.addf %373, %372 : vector<8x128xf32>
    %375 = arith.addf %374, %10 : vector<8x128xf32>
    %376 = arith.negf %375 : vector<8x128xf32>
    %377 = math.exp %376 : vector<8x128xf32>
    %cst_87 = arith.constant 1.000000e+00 : f32
    %378 = vector.broadcast %cst_87 : f32 to vector<8x128xf32>
    %379 = arith.addf %378, %377 : vector<8x128xf32>
    %380 = arith.divf %378, %379 : vector<8x128xf32>
    %381 = vector.extract_strided_slice %380 {offsets = [0, 0], sizes = [8, 32], strides = [1, 1]} : vector<8x128xf32> to vector<8x32xf32>
    %382 = vector.extract_strided_slice %380 {offsets = [0, 32], sizes = [8, 32], strides = [1, 1]} : vector<8x128xf32> to vector<8x32xf32>
    %383 = vector.extract_strided_slice %380 {offsets = [0, 64], sizes = [8, 32], strides = [1, 1]} : vector<8x128xf32> to vector<8x32xf32>
    %cst_88 = arith.constant 2.000000e+00 : f32
    %384 = vector.broadcast %cst_88 : f32 to vector<8x32xf32>
    %385 = arith.mulf %384, %383 : vector<8x32xf32>
    %cst_89 = arith.constant 1.000000e+00 : f32
    %386 = vector.broadcast %cst_89 : f32 to vector<8x32xf32>
    %387 = arith.subf %385, %386 : vector<8x32xf32>
    %388 = vector.extract_strided_slice %380 {offsets = [0, 96], sizes = [8, 32], strides = [1, 1]} : vector<8x128xf32> to vector<8x32xf32>
    %389 = arith.mulf %382, %343 : vector<8x32xf32>
    %390 = arith.mulf %381, %387 : vector<8x32xf32>
    %391 = arith.addf %389, %390 : vector<8x32xf32>
    %392 = math.tanh %391 : vector<8x32xf32>
    %393 = arith.mulf %388, %392 : vector<8x32xf32>
    %c0_90 = arith.constant 0 : index
    %c0_91 = arith.constant 0 : index
    %394 = vector.load %arg6[%c0_90, %c0_91] : memref<1x32xf32, #tpu.memory_space<vmem>>, vector<1x32xf32>
    %395 = vector.broadcast %394 : vector<1x32xf32> to vector<8x32xf32>
    %396 = arith.mulf %393, %395 : vector<8x32xf32>
    %cst_92 = arith.constant dense<0.000000e+00> : vector<8xf32>
    %397 = vector.multi_reduction <add>, %396, %cst_92 [1] : vector<8x32xf32> to vector<8xf32>
    %398 = vector.shape_cast %397 : vector<8xf32> to vector<8x1xf32>
    %c0_93 = arith.constant 0 : index
    %c0_94 = arith.constant 0 : index
    %399 = vector.load %arg7[%c0_93, %c0_94] : memref<1x1xf32, #tpu.memory_space<vmem>>, vector<1x1xf32>
    %400 = vector.broadcast %399 : vector<1x1xf32> to vector<8x1xf32>
    %401 = arith.addf %398, %400 : vector<8x1xf32>
    %c0_95 = arith.constant 0 : index
    %c0_96 = arith.constant 0 : index
    %402 = vector.load %arg8[%c0_95, %c0_96] : memref<8x1xf32, #tpu.memory_space<vmem>>, vector<8x1xf32>
    tpu.vector_store %arg8[%c0_95, %c0_96], %401 {strides = array<i32>} : memref<8x1xf32, #tpu.memory_space<vmem>>, vector<8x1xf32>,
    return
  }
}

</mosaic_0001>

<llo_original>
// kernel: lstm_model_forward.1
$region0: #{lstm_model_forward.1}
  #allocation0 [shape = 'u32[]', space=smem, size = 0x4, offset = 0x4, fixed_abs, tag = 'smem constant byte address 0x4 - core index']
  #allocation1 [shape = 'u32[144,128]{1,0:T(1,128)}', space=vmem, size = 0x12000, scoped, tag = 'internal scratch']
  #allocation2 [shape = 'f32[1,1]{1,0:T(1,128)S(1)}', space=vmem, size = 0x200, scoped, tag = 'scoped memory for lstm_model_forward.1']
  %s0 = inlined_call_operand.vmem [shape: f32[8,64], index: 0, kind: input, shape index: {}]
  %s1 = inlined_call_operand.vmem [shape: f32[8,128], index: 1, kind: input, shape index: {}]
  %s2 = inlined_call_operand.vmem [shape: f32[1,128], index: 2, kind: input, shape index: {}]
  %s3 = inlined_call_operand.vmem [shape: f32[32,256], index: 3, kind: input, shape index: {}]
  %s4 = inlined_call_operand.vmem [shape: f32[32,128], index: 4, kind: input, shape index: {}]
  %s5 = inlined_call_operand.vmem [shape: f32[1,128], index: 5, kind: input, shape index: {}]
  %s6 = inlined_call_operand.vmem [shape: f32[1,32], index: 6, kind: input, shape index: {}]
  %s7 = inlined_call_operand.<no memory space> [shape: f32[1,1], index: 7, kind: input, shape index: {}]
  %s8 = inlined_call_operand.vmem [shape: f32[8,1], index: 8, kind: output, shape index: {}]
  %s9 = sld [smem:[#allocation0]]
  $region42: #{lstm_model_forward.1} parent=0
    _
  %s11 = ssub.s32 1, %s9
  %s12 = scalar_select 0, %s11, %s9
  %v13 = vstv %s7
  %14 = vst [vmem:[#allocation2] sm:$0x1] %v13
  // Predicated region
  $region2: #{lstm_model_forward.1} parent=0 // pred_check
    _
  $region3: #{lstm_model_forward.1} parent=0 // pred_check_branch
    %16 = sbr.rel (0) target = $region5
  $region4: #{lstm_model_forward.1} parent=0 // pred_region
    _
  $region5: #{lstm_model_forward.1} parent=0 // pred_fallthru
    _
  // Predicated region
  $region6: #{lstm_model_forward.1} parent=0 // pred_check
    _
  $region7: #{lstm_model_forward.1} parent=0 // pred_check_branch
    %18 = sbr.rel (0) target = $region9
  $region8: #{lstm_model_forward.1} parent=0 // pred_region
    _
  $region9: #{lstm_model_forward.1} parent=0 // pred_fallthru
    _
  // Predicated region
  $region10: #{lstm_model_forward.1} parent=0 // pred_check
    _
  $region11: #{lstm_model_forward.1} parent=0 // pred_check_branch
    %20 = sbr.rel (0) target = $region13
  $region12: #{lstm_model_forward.1} parent=0 // pred_region
    _
  $region13: #{lstm_model_forward.1} parent=0 // pred_fallthru
    _
  // Predicated region
  $region14: #{lstm_model_forward.1} parent=0 // pred_check
    _
  $region15: #{lstm_model_forward.1} parent=0 // pred_check_branch
    %22 = sbr.rel (0) target = $region17
  $region16: #{lstm_model_forward.1} parent=0 // pred_region
    _
  $region17: #{lstm_model_forward.1} parent=0 // pred_fallthru
    _
  // Predicated region
  $region18: #{lstm_model_forward.1} parent=0 // pred_check
    _
  $region19: #{lstm_model_forward.1} parent=0 // pred_check_branch
    %24 = sbr.rel (0) target = $region21
  $region20: #{lstm_model_forward.1} parent=0 // pred_region
    _
  $region21: #{lstm_model_forward.1} parent=0 // pred_fallthru
    _
  // Predicated region
  $region22: #{lstm_model_forward.1} parent=0 // pred_check
    _
  $region23: #{lstm_model_forward.1} parent=0 // pred_check_branch
    %26 = sbr.rel (0) target = $region25
  $region24: #{lstm_model_forward.1} parent=0 // pred_region
    _
  $region25: #{lstm_model_forward.1} parent=0 // pred_fallthru
    _
  // Predicated region
  $region26: #{lstm_model_forward.1} parent=0 // pred_check
    _
  $region27: #{lstm_model_forward.1} parent=0 // pred_check_branch
    %28 = sbr.rel (0) target = $region29
  $region28: #{lstm_model_forward.1} parent=0 // pred_region
    _
  $region29: #{lstm_model_forward.1} parent=0 // pred_fallthru
    _
  // Predicated region
  $region30: #{lstm_model_forward.1} parent=0 // pred_check
    _
  $region31: #{lstm_model_forward.1} parent=0 // pred_check_branch
    %30 = sbr.rel (0) target = $region33
  $region32: #{lstm_model_forward.1} parent=0 // pred_region
    _
  $region33: #{lstm_model_forward.1} parent=0 // pred_fallthru
    _
  %v32 = vld [vmem:[%s3] sm:$0xff]
  %v33 = vld [vmem:[%s3 + $0x8] sm:$0xff]
  %v34 = vld [vmem:[%s3 + $0x10] sm:$0xff]
  %v35 = vld [vmem:[%s3 + $0x18] sm:$0xff]
  %v36 = vld [vmem:[%s3 + $0x20] sm:$0xff]
  %v37 = vld [vmem:[%s3 + $0x28] sm:$0xff]
  %v38 = vld [vmem:[%s3 + $0x30] sm:$0xff]
  %v39 = vld [vmem:[%s3 + $0x38] sm:$0xff]
  %v40 = vpack.c.bf16 %v34, %v32
  %v41 = vpack.c.bf16 %v35, %v33
  %v42 = vpack.c.bf16 %v38, %v36
  %v43 = vpack.c.bf16 %v39, %v37
  %v44 = vld [vmem:[%s4] sm:$0xff]
  %v45 = vld [vmem:[%s4 + $0x8] sm:$0xff]
  %v46 = vld [vmem:[%s4 + $0x10] sm:$0xff]
  %v47 = vld [vmem:[%s4 + $0x18] sm:$0xff]
  %v48 = vpack.c.bf16 %v45, %v44
  %v49 = vpack.c.bf16 %v47, %v46
  %v50 = vld [vmem:[%s1] sm:$0xff]
  %v51 = vld [vmem:[%s2] sm:$0x1]
  %v53 = vlaneseq
  %v54 = vshrl.u32 %v53, 7
  %v55 = vsub.s32 0, %v54
  %v56 = vrot.slane %v51, %v55
  %v58 = vld [vmem:[%s5] sm:$0x1]
  %v60 = vlaneseq
  %v61 = vshrl.u32 %v60, 7
  %v62 = vsub.s32 0, %v61
  %v63 = vrot.slane %v58, %v62
  %v65 = vld [vmem:[%s0] sm:$0xff]
  %vm66 = vcmask 64512
  %v68 = vsel %vm66, %v65, 0
  %70 = vmatprep.subr.mxu0 0.0
  %71 = vmatpush1.msra.mxu0 %v50
  %72 = vmatprep.subr.mxu0 0.0
  %73 = vmatpush1.msra.mxu0 0.0
  %74 = vmatprep.subr.mxu0 0.0
  %75 = vmatpush1.msra.mxu0 0.0
  %76 = vmatprep.subr.mxu0 0.0
  %77 = vmatpush1.msra.mxu0 0.0
  %78 = vmatprep.subr.mxu0 0.0
  %79 = vmatpush1.msra.mxu0 0.0
  %80 = vmatprep.subr.mxu0 0.0
  %81 = vmatpush1.msra.mxu0 0.0
  %82 = vmatprep.subr.mxu0 0.0
  %83 = vmatpush1.msra.mxu0 0.0
  %84 = vmatprep.subr.mxu0 0.0
  %85 = vmatpush1.msra.mxu0 0.0
  %86 = vmatprep.subr.mxu0 0.0
  %87 = vmatpush1.msra.mxu0 0.0
  %88 = vmatprep.subr.mxu0 0.0
  %89 = vmatpush1.msra.mxu0 0.0
  %90 = vmatprep.subr.mxu0 0.0
  %91 = vmatpush1.msra.mxu0 0.0
  %92 = vmatprep.subr.mxu0 0.0
  %93 = vmatpush1.msra.mxu0 0.0
  %94 = vmatprep.subr.mxu0 0.0
  %95 = vmatpush1.msra.mxu0 0.0
  %96 = vmatprep.subr.mxu0 0.0
  %97 = vmatpush1.msra.mxu0 0.0
  %98 = vmatprep.subr.mxu0 0.0
  %99 = vmatpush1.msra.mxu0 0.0
  %100 = vmatprep.subr.mxu0 0.0
  %101 = vmatpush1.msra.mxu0 0.0
  %102 = vmatprep.subr.mxu0 0.0
  %103 = vmatpush1.msra.mxu0 0.0
  %104 = vmatprep.subr.mxu0 0.0
  %105 = vmatpush1.msra.mxu0 0.0
  %106 = vmatprep.subr.mxu0 0.0
  %107 = vmatpush1.msra.mxu0 0.0
  %108 = vmatprep.subr.mxu0 0.0
  %109 = vmatpush1.msra.mxu0 0.0
  %110 = vmatprep.subr.mxu0 0.0
  %111 = vmatpush1.msra.mxu0 0.0
  %112 = vmatprep.subr.mxu0 0.0
  %113 = vmatpush1.msra.mxu0 0.0
  %114 = vmatprep.subr.mxu0 0.0
  %115 = vmatpush1.msra.mxu0 0.0
  %116 = vmatprep.subr.mxu0 0.0
  %117 = vmatpush1.msra.mxu0 0.0
  %118 = vmatprep.subr.mxu0 0.0
  %119 = vmatpush1.msra.mxu0 0.0
  %120 = vmatprep.subr.mxu0 0.0
  %121 = vmatpush1.msra.mxu0 0.0
  %122 = vmatprep.subr.mxu0 0.0
  %123 = vmatpush1.msra.mxu0 0.0
  %124 = vmatprep.subr.mxu0 0.0
  %125 = vmatpush1.msra.mxu0 0.0
  %126 = vmatprep.subr.mxu0 0.0
  %127 = vmatpush1.msra.mxu0 0.0
  %128 = vmatprep.subr.mxu0 0.0
  %129 = vmatpush1.msra.mxu0 0.0
  %130 = vmatprep.subr.mxu0 0.0
  %131 = vmatpush1.msra.mxu0 0.0
  %132 = vmatprep.subr.mxu0 0.0
  %133 = vmatpush1.msra.mxu0 0.0
  %134 = vmatprep.mubr.f32.mxu0 0.0
  %135 = vmatmul.mubr.f32.gmra.mrb[0].mxu0 %v68
  %v136 = vpop.f32.mrb[0].mxu0
  %v137 = vadd.f32 %v56, %v136
  %v138 = vpop.f32.mrb[0].mxu0
  %139 = vdwg.mxu0
  %v140 = vxor.u32 %v137, 2147483648
  %v141 = vmul.f32 %v140, 1.442695
  %v142 = vpow.pop %v141
  %v143 = vadd.f32 %v142, 1.0
  %v144 = vrcp.pop %v143
  %v145 = vmul.f32 1.0, %v144
  %v146 = vmul.f32 %v145, 2.0
  %v147 = vsub.f32 %v146, 1.0
  %v148 = vmul.f32 %v145, 0.0
  %150 = vrot.lane.b32.xlu0 %v147, 64
  %v151 = vpop.permute.xlu0 %150
  %v153 = vmul.f32 %v145, %v151
  %155 = vrot.lane.b32.xlu0 %v153, 32
  %v156 = vpop.permute.xlu0 %155
  %v158 = vadd.f32 %v148, %v156
  %v159 = vtanh.pop %v158
  %161 = vrot.lane.b32.xlu0 %v159, 64
  %v162 = vpop.permute.xlu0 %161
  %v164 = vmul.f32 %v145, %v162
  %v165 = vpack.c.bf16 %v164, %v164
  %167 = vrot.lane.b32.xlu0 %v165, 32
  %v168 = vpop.permute.xlu0 %167
  %vm169 = vcmask 261120
  %v171 = vsel %vm169, %v168, 0
  %173 = vmatprep.subr.bf16.mxu0 %v41
  %174 = vmatpush1.bf16.msra.mxu0 %v40
  %175 = vmatprep.subr.bf16.mxu0 %v43
  %176 = vmatpush1.bf16.msra.mxu0 %v42
  %177 = vmatprep.subr.bf16.mxu0 0
  %178 = vmatpush1.bf16.msra.mxu0 0
  %179 = vmatprep.subr.bf16.mxu0 0
  %180 = vmatpush1.bf16.msra.mxu0 0
  %181 = vmatprep.subr.bf16.mxu0 0
  %182 = vmatpush1.bf16.msra.mxu0 0
  %183 = vmatprep.subr.bf16.mxu0 0
  %184 = vmatpush1.bf16.msra.mxu0 0
  %185 = vmatprep.subr.bf16.mxu0 0
  %186 = vmatpush1.bf16.msra.mxu0 0
  %187 = vmatprep.subr.bf16.mxu0 0
  %188 = vmatpush1.bf16.msra.mxu0 0
  %189 = vmatprep.subr.bf16.mxu0 0
  %190 = vmatpush1.bf16.msra.mxu0 0
  %191 = vmatprep.subr.bf16.mxu0 0
  %192 = vmatpush1.bf16.msra.mxu0 0
  %193 = vmatprep.subr.bf16.mxu0 0
  %194 = vmatpush1.bf16.msra.mxu0 0
  %195 = vmatprep.subr.bf16.mxu0 0
  %196 = vmatpush1.bf16.msra.mxu0 0
  %197 = vmatprep.subr.bf16.mxu0 0
  %198 = vmatpush1.bf16.msra.mxu0 0
  %199 = vmatprep.subr.bf16.mxu0 0
  %200 = vmatpush1.bf16.msra.mxu0 0
  %201 = vmatprep.subr.bf16.mxu0 0
  %202 = vmatpush1.bf16.msra.mxu0 0
  %203 = vmatprep.subr.bf16.mxu0 0
  %204 = vmatpush1.bf16.msra.mxu0 0
  %205 = vmatprep.mubr.bf16.mxu0 0
  %206 = vmatmul.mubr.bf16.gmra.mrb[0].mxu0 %v171
  %v207 = vpop.f32.mrb[0].mxu0
  %v208 = vadd.f32 0.0, %v207
  %v209 = vpop.f32.mrb[0].mxu0
  %v210 = vadd.f32 0.0, %v209
  %v211 = vpop.f32.mrb[0].mxu0
  %v212 = vpop.f32.mrb[0].mxu0
  %213 = vdwg.mxu0
  %v215 = vsel %vm169, 0, 0
  %217 = vmatprep.subr.bf16.mxu0 0
  %218 = vmatpush1.bf16.msra.mxu0 %v48
  %219 = vmatprep.subr.bf16.mxu0 0
  %220 = vmatpush1.bf16.msra.mxu0 %v49
  %221 = vmatprep.subr.bf16.mxu0 0
  %222 = vmatpush1.bf16.msra.mxu0 0
  %223 = vmatprep.subr.bf16.mxu0 0
  %224 = vmatpush1.bf16.msra.mxu0 0
  %225 = vmatprep.subr.bf16.mxu0 0
  %226 = vmatpush1.bf16.msra.mxu0 0
  %227 = vmatprep.subr.bf16.mxu0 0
  %228 = vmatpush1.bf16.msra.mxu0 0
  %229 = vmatprep.subr.bf16.mxu0 0
  %230 = vmatpush1.bf16.msra.mxu0 0
  %231 = vmatprep.subr.bf16.mxu0 0
  %232 = vmatpush1.bf16.msra.mxu0 0
  %233 = vmatprep.subr.bf16.mxu0 0
  %234 = vmatpush1.bf16.msra.mxu0 0
  %235 = vmatprep.subr.bf16.mxu0 0
  %236 = vmatpush1.bf16.msra.mxu0 0
  %237 = vmatprep.subr.bf16.mxu0 0
  %238 = vmatpush1.bf16.msra.mxu0 0
  %239 = vmatprep.subr.bf16.mxu0 0
  %240 = vmatpush1.bf16.msra.mxu0 0
  %241 = vmatprep.subr.bf16.mxu0 0
  %242 = vmatpush1.bf16.msra.mxu0 0
  %243 = vmatprep.subr.bf16.mxu0 0
  %244 = vmatpush1.bf16.msra.mxu0 0
  %245 = vmatprep.subr.bf16.mxu0 0
  %246 = vmatpush1.bf16.msra.mxu0 0
  %247 = vmatprep.subr.bf16.mxu0 0
  %248 = vmatpush1.bf16.msra.mxu0 0
  %249 = vmatprep.mubr.bf16.mxu0 0
  %250 = vmatmul.mubr.bf16.gmra.mrb[0].mxu0 %v215
  %v251 = vpop.f32.mrb[0].mxu0
  %v252 = vadd.f32 0.0, %v251
  %v253 = vpop.f32.mrb[0].mxu0
  %v254 = vpop.f32.mrb[0].mxu0
  %v255 = vpop.f32.mrb[0].mxu0
  %256 = vdwg.mxu0
  %v257 = vadd.f32 %v210, %v252
  %v258 = vadd.f32 %v257, %v63
  %v259 = vxor.u32 %v258, 2147483648
  %v260 = vmul.f32 %v259, 1.442695
  %v261 = vpow.pop %v260
  %v262 = vadd.f32 %v261, 1.0
  %v263 = vrcp.pop %v262
  %v264 = vmul.f32 1.0, %v263
  %v265 = vmul.f32 %v264, 2.0
  %v266 = vsub.f32 %v265, 1.0
  %v267 = vmul.f32 %v264, 0.0
  %269 = vrot.lane.b32.xlu0 %v266, 64
  %v270 = vpop.permute.xlu0 %269
  %v272 = vmul.f32 %v264, %v270
  %274 = vrot.lane.b32.xlu0 %v272, 32
  %v275 = vpop.permute.xlu0 %274
  %v277 = vadd.f32 %v267, %v275
  %v278 = vtanh.pop %v277
  %280 = vrot.lane.b32.xlu0 %v278, 64
  %v281 = vpop.permute.xlu0 %280
  %v283 = vmul.f32 %v264, %v281
  %284 = vrot.lane.b32.xlu0 %v65, 120
  %v285 = vpop.permute.xlu0 %284
  %v286 = vsel %vm66, %v285, 0
  %288 = vmatprep.subr.mxu0 0.0
  %289 = vmatpush1.msra.mxu0 %v50
  %290 = vmatprep.subr.mxu0 0.0
  %291 = vmatpush1.msra.mxu0 0.0
  %292 = vmatprep.subr.mxu0 0.0
  %293 = vmatpush1.msra.mxu0 0.0
  %294 = vmatprep.subr.mxu0 0.0
  %295 = vmatpush1.msra.mxu0 0.0
  %296 = vmatprep.subr.mxu0 0.0
  %297 = vmatpush1.msra.mxu0 0.0
  %298 = vmatprep.subr.mxu0 0.0
  %299 = vmatpush1.msra.mxu0 0.0
  %300 = vmatprep.subr.mxu0 0.0
  %301 = vmatpush1.msra.mxu0 0.0
  %302 = vmatprep.subr.mxu0 0.0
  %303 = vmatpush1.msra.mxu0 0.0
  %304 = vmatprep.subr.mxu0 0.0
  %305 = vmatpush1.msra.mxu0 0.0
  %306 = vmatprep.subr.mxu0 0.0
  %307 = vmatpush1.msra.mxu0 0.0
  %308 = vmatprep.subr.mxu0 0.0
  %309 = vmatpush1.msra.mxu0 0.0
  %310 = vmatprep.subr.mxu0 0.0
  %311 = vmatpush1.msra.mxu0 0.0
  %312 = vmatprep.subr.mxu0 0.0
  %313 = vmatpush1.msra.mxu0 0.0
  %314 = vmatprep.subr.mxu0 0.0
  %315 = vmatpush1.msra.mxu0 0.0
  %316 = vmatprep.subr.mxu0 0.0
  %317 = vmatpush1.msra.mxu0 0.0
  %318 = vmatprep.subr.mxu0 0.0
  %319 = vmatpush1.msra.mxu0 0.0
  %320 = vmatprep.subr.mxu0 0.0
  %321 = vmatpush1.msra.mxu0 0.0
  %322 = vmatprep.subr.mxu0 0.0
  %323 = vmatpush1.msra.mxu0 0.0
  %324 = vmatprep.subr.mxu0 0.0
  %325 = vmatpush1.msra.mxu0 0.0
  %326 = vmatprep.subr.mxu0 0.0
  %327 = vmatpush1.msra.mxu0 0.0
  %328 = vmatprep.subr.mxu0 0.0
  %329 = vmatpush1.msra.mxu0 0.0
  %330 = vmatprep.subr.mxu0 0.0
  %331 = vmatpush1.msra.mxu0 0.0
  %332 = vmatprep.subr.mxu0 0.0
  %333 = vmatpush1.msra.mxu0 0.0
  %334 = vmatprep.subr.mxu0 0.0
  %335 = vmatpush1.msra.mxu0 0.0
  %336 = vmatprep.subr.mxu0 0.0
  %337 = vmatpush1.msra.mxu0 0.0
  %338 = vmatprep.subr.mxu0 0.0
  %339 = vmatpush1.msra.mxu0 0.0
  %340 = vmatprep.subr.mxu0 0.0
  %341 = vmatpush1.msra.mxu0 0.0
  %342 = vmatprep.subr.mxu0 0.0
  %343 = vmatpush1.msra.mxu0 0.0
  %344 = vmatprep.subr.mxu0 0.0
  %345 = vmatpush1.msra.mxu0 0.0
  %346 = vmatprep.subr.mxu0 0.0
  %347 = vmatpush1.msra.mxu0 0.0
  %348 = vmatprep.subr.mxu0 0.0
  %349 = vmatpush1.msra.mxu0 0.0
  %350 = vmatprep.subr.mxu0 0.0
  %351 = vmatpush1.msra.mxu0 0.0
  %352 = vmatprep.mubr.f32.mxu0 0.0
  %353 = vmatmul.mubr.f32.gmra.mrb[0].mxu0 %v286
  %v354 = vpop.f32.mrb[0].mxu0
  %v355 = vadd.f32 %v56, %v354
  %v356 = vpop.f32.mrb[0].mxu0
  %357 = vdwg.mxu0
  %v358 = vadd.f32 %v208, %v355
  %v359 = vxor.u32 %v358, 2147483648
  %v360 = vmul.f32 %v359, 1.442695
  %v361 = vpow.pop %v360
  %v362 = vadd.f32 %v361, 1.0
  %v363 = vrcp.pop %v362
  %v364 = vmul.f32 1.0, %v363
  %v365 = vmul.f32 %v364, 2.0
  %v366 = vsub.f32 %v365, 1.0
  %v367 = vmul.f32 %v364, %v158
  %369 = vrot.lane.b32.xlu0 %v366, 64
  %v370 = vpop.permute.xlu0 %369
  %v372 = vmul.f32 %v364, %v370
  %374 = vrot.lane.b32.xlu0 %v372, 32
  %v375 = vpop.permute.xlu0 %374
  %v377 = vadd.f32 %v367, %v375
  %v378 = vtanh.pop %v377
  %380 = vrot.lane.b32.xlu0 %v378, 64
  %v381 = vpop.permute.xlu0 %380
  %v383 = vmul.f32 %v364, %v381
  %v384 = vpack.c.bf16 %v383, %v383
  %386 = vrot.lane.b32.xlu0 %v384, 32
  %v387 = vpop.permute.xlu0 %386
  %v389 = vsel %vm169, %v387, 0
  %391 = vmatprep.subr.bf16.mxu0 %v41
  %392 = vmatpush1.bf16.msra.mxu0 %v40
  %393 = vmatprep.subr.bf16.mxu0 %v43
  %394 = vmatpush1.bf16.msra.mxu0 %v42
  %395 = vmatprep.subr.bf16.mxu0 0
  %396 = vmatpush1.bf16.msra.mxu0 0
  %397 = vmatprep.subr.bf16.mxu0 0
  %398 = vmatpush1.bf16.msra.mxu0 0
  %399 = vmatprep.subr.bf16.mxu0 0
  %400 = vmatpush1.bf16.msra.mxu0 0
  %401 = vmatprep.subr.bf16.mxu0 0
  %402 = vmatpush1.bf16.msra.mxu0 0
  %403 = vmatprep.subr.bf16.mxu0 0
  %404 = vmatpush1.bf16.msra.mxu0 0
  %405 = vmatprep.subr.bf16.mxu0 0
  %406 = vmatpush1.bf16.msra.mxu0 0
  %407 = vmatprep.subr.bf16.mxu0 0
  %408 = vmatpush1.bf16.msra.mxu0 0
  %409 = vmatprep.subr.bf16.mxu0 0
  %410 = vmatpush1.bf16.msra.mxu0 0
  %411 = vmatprep.subr.bf16.mxu0 0
  %412 = vmatpush1.bf16.msra.mxu0 0
  %413 = vmatprep.subr.bf16.mxu0 0
  %414 = vmatpush1.bf16.msra.mxu0 0
  %415 = vmatprep.subr.bf16.mxu0 0
  %416 = vmatpush1.bf16.msra.mxu0 0
  %417 = vmatprep.subr.bf16.mxu0 0
  %418 = vmatpush1.bf16.msra.mxu0 0
  %419 = vmatprep.subr.bf16.mxu0 0
  %420 = vmatpush1.bf16.msra.mxu0 0
  %421 = vmatprep.subr.bf16.mxu0 0
  %422 = vmatpush1.bf16.msra.mxu0 0
  %423 = vmatprep.mubr.bf16.mxu0 0
  %424 = vmatmul.mubr.bf16.gmra.mrb[0].mxu0 %v389
  %v425 = vpop.f32.mrb[0].mxu0
  %v426 = vadd.f32 0.0, %v425
  %v427 = vpop.f32.mrb[0].mxu0
  %v428 = vadd.f32 0.0, %v427
  %v429 = vpop.f32.mrb[0].mxu0
  %v430 = vpop.f32.mrb[0].mxu0
  %431 = vdwg.mxu0
  %v432 = vpack.c.bf16 %v283, %v283
  %434 = vrot.lane.b32.xlu0 %v432, 32
  %v435 = vpop.permute.xlu0 %434
  %v437 = vsel %vm169, %v435, 0
  %439 = vmatprep.subr.bf16.mxu0 0
  %440 = vmatpush1.bf16.msra.mxu0 %v48
  %441 = vmatprep.subr.bf16.mxu0 0
  %442 = vmatpush1.bf16.msra.mxu0 %v49
  %443 = vmatprep.subr.bf16.mxu0 0
  %444 = vmatpush1.bf16.msra.mxu0 0
  %445 = vmatprep.subr.bf16.mxu0 0
  %446 = vmatpush1.bf16.msra.mxu0 0
  %447 = vmatprep.subr.bf16.mxu0 0
  %448 = vmatpush1.bf16.msra.mxu0 0
  %449 = vmatprep.subr.bf16.mxu0 0
  %450 = vmatpush1.bf16.msra.mxu0 0
  %451 = vmatprep.subr.bf16.mxu0 0
  %452 = vmatpush1.bf16.msra.mxu0 0
  %453 = vmatprep.subr.bf16.mxu0 0
  %454 = vmatpush1.bf16.msra.mxu0 0
  %455 = vmatprep.subr.bf16.mxu0 0
  %456 = vmatpush1.bf16.msra.mxu0 0
  %457 = vmatprep.subr.bf16.mxu0 0
  %458 = vmatpush1.bf16.msra.mxu0 0
  %459 = vmatprep.subr.bf16.mxu0 0
  %460 = vmatpush1.bf16.msra.mxu0 0
  %461 = vmatprep.subr.bf16.mxu0 0
  %462 = vmatpush1.bf16.msra.mxu0 0
  %463 = vmatprep.subr.bf16.mxu0 0
  %464 = vmatpush1.bf16.msra.mxu0 0
  %465 = vmatprep.subr.bf16.mxu0 0
  %466 = vmatpush1.bf16.msra.mxu0 0
  %467 = vmatprep.subr.bf16.mxu0 0
  %468 = vmatpush1.bf16.msra.mxu0 0
  %469 = vmatprep.subr.bf16.mxu0 0
  %470 = vmatpush1.bf16.msra.mxu0 0
  %471 = vmatprep.mubr.bf16.mxu0 0
  %472 = vmatmul.mubr.bf16.gmra.mrb[0].mxu0 %v437
  %v473 = vpop.f32.mrb[0].mxu0
  %v474 = vadd.f32 0.0, %v473
  %v475 = vpop.f32.mrb[0].mxu0
  %v476 = vpop.f32.mrb[0].mxu0
  %v477 = vpop.f32.mrb[0].mxu0
  %478 = vdwg.mxu0
  %v479 = vadd.f32 %v428, %v474
  %v480 = vadd.f32 %v479, %v63
  %v481 = vxor.u32 %v480, 2147483648
  %v482 = vmul.f32 %v481, 1.442695
  %v483 = vpow.pop %v482
  %v484 = vadd.f32 %v483, 1.0
  %v485 = vrcp.pop %v484
  %v486 = vmul.f32 1.0, %v485
  %v487 = vmul.f32 %v486, 2.0
  %v488 = vsub.f32 %v487, 1.0
  %v489 = vmul.f32 %v486, %v277
  %491 = vrot.lane.b32.xlu0 %v488, 64
  %v492 = vpop.permute.xlu0 %491
  %v494 = vmul.f32 %v486, %v492
  %496 = vrot.lane.b32.xlu0 %v494, 32
  %v497 = vpop.permute.xlu0 %496
  %v499 = vadd.f32 %v489, %v497
  %v500 = vtanh.pop %v499
  %502 = vrot.lane.b32.xlu0 %v500, 64
  %v503 = vpop.permute.xlu0 %502
  %v505 = vmul.f32 %v486, %v503
  %506 = vrot.lane.b32.xlu0 %v65, 112
  %v507 = vpop.permute.xlu0 %506
  %v508 = vsel %vm66, %v507, 0
  %510 = vmatprep.subr.mxu0 0.0
  %511 = vmatpush1.msra.mxu0 %v50
  %512 = vmatprep.subr.mxu0 0.0
  %513 = vmatpush1.msra.mxu0 0.0
  %514 = vmatprep.subr.mxu0 0.0
  %515 = vmatpush1.msra.mxu0 0.0
  %516 = vmatprep.subr.mxu0 0.0
  %517 = vmatpush1.msra.mxu0 0.0
  %518 = vmatprep.subr.mxu0 0.0
  %519 = vmatpush1.msra.mxu0 0.0
  %520 = vmatprep.subr.mxu0 0.0
  %521 = vmatpush1.msra.mxu0 0.0
  %522 = vmatprep.subr.mxu0 0.0
  %523 = vmatpush1.msra.mxu0 0.0
  %524 = vmatprep.subr.mxu0 0.0
  %525 = vmatpush1.msra.mxu0 0.0
  %526 = vmatprep.subr.mxu0 0.0
  %527 = vmatpush1.msra.mxu0 0.0
  %528 = vmatprep.subr.mxu0 0.0
  %529 = vmatpush1.msra.mxu0 0.0
  %530 = vmatprep.subr.mxu0 0.0
  %531 = vmatpush1.msra.mxu0 0.0
  %532 = vmatprep.subr.mxu0 0.0
  %533 = vmatpush1.msra.mxu0 0.0
  %534 = vmatprep.subr.mxu0 0.0
  %535 = vmatpush1.msra.mxu0 0.0
  %536 = vmatprep.subr.mxu0 0.0
  %537 = vmatpush1.msra.mxu0 0.0
  %538 = vmatprep.subr.mxu0 0.0
  %539 = vmatpush1.msra.mxu0 0.0
  %540 = vmatprep.subr.mxu0 0.0
  %541 = vmatpush1.msra.mxu0 0.0
  %542 = vmatprep.subr.mxu0 0.0
  %543 = vmatpush1.msra.mxu0 0.0
  %544 = vmatprep.subr.mxu0 0.0
  %545 = vmatpush1.msra.mxu0 0.0
  %546 = vmatprep.subr.mxu0 0.0
  %547 = vmatpush1.msra.mxu0 0.0
  %548 = vmatprep.subr.mxu0 0.0
  %549 = vmatpush1.msra.mxu0 0.0
  %550 = vmatprep.subr.mxu0 0.0
  %551 = vmatpush1.msra.mxu0 0.0
  %552 = vmatprep.subr.mxu0 0.0
  %553 = vmatpush1.msra.mxu0 0.0
  %554 = vmatprep.subr.mxu0 0.0
  %555 = vmatpush1.msra.mxu0 0.0
  %556 = vmatprep.subr.mxu0 0.0
  %557 = vmatpush1.msra.mxu0 0.0
  %558 = vmatprep.subr.mxu0 0.0
  %559 = vmatpush1.msra.mxu0 0.0
  %560 = vmatprep.subr.mxu0 0.0
  %561 = vmatpush1.msra.mxu0 0.0
  %562 = vmatprep.subr.mxu0 0.0
  %563 = vmatpush1.msra.mxu0 0.0
  %564 = vmatprep.subr.mxu0 0.0
  %565 = vmatpush1.msra.mxu0 0.0
  %566 = vmatprep.subr.mxu0 0.0
  %567 = vmatpush1.msra.mxu0 0.0
  %568 = vmatprep.subr.mxu0 0.0
  %569 = vmatpush1.msra.mxu0 0.0
  %570 = vmatprep.subr.mxu0 0.0
  %571 = vmatpush1.msra.mxu0 0.0
  %572 = vmatprep.subr.mxu0 0.0
  %573 = vmatpush1.msra.mxu0 0.0
  %574 = vmatprep.mubr.f32.mxu0 0.0
  %575 = vmatmul.mubr.f32.gmra.mrb[0].mxu0 %v508
  %v576 = vpop.f32.mrb[0].mxu0
  %v577 = vadd.f32 %v56, %v576
  %v578 = vpop.f32.mrb[0].mxu0
  %579 = vdwg.mxu0
  %v580 = vadd.f32 %v426, %v577
  %v581 = vxor.u32 %v580, 2147483648
  %v582 = vmul.f32 %v581, 1.442695
  %v583 = vpow.pop %v582
  %v584 = vadd.f32 %v583, 1.0
  %v585 = vrcp.pop %v584
  %v586 = vmul.f32 1.0, %v585
  %v587 = vmul.f32 %v586, 2.0
  %v588 = vsub.f32 %v587, 1.0
  %v589 = vmul.f32 %v586, %v377
  %591 = vrot.lane.b32.xlu0 %v588, 64
  %v592 = vpop.permute.xlu0 %591
  %v594 = vmul.f32 %v586, %v592
  %596 = vrot.lane.b32.xlu0 %v594, 32
  %v597 = vpop.permute.xlu0 %596
  %v599 = vadd.f32 %v589, %v597
  %v600 = vtanh.pop %v599
  %602 = vrot.lane.b32.xlu0 %v600, 64
  %v603 = vpop.permute.xlu0 %602
  %v605 = vmul.f32 %v586, %v603
  %v606 = vpack.c.bf16 %v605, %v605
  %608 = vrot.lane.b32.xlu0 %v606, 32
  %v609 = vpop.permute.xlu0 %608
  %v611 = vsel %vm169, %v609, 0
  %613 = vmatprep.subr.bf16.mxu0 %v41
  %614 = vmatpush1.bf16.msra.mxu0 %v40
  %615 = vmatprep.subr.bf16.mxu0 %v43
  %616 = vmatpush1.bf16.msra.mxu0 %v42
  %617 = vmatprep.subr.bf16.mxu0 0
  %618 = vmatpush1.bf16.msra.mxu0 0
  %619 = vmatprep.subr.bf16.mxu0 0
  %620 = vmatpush1.bf16.msra.mxu0 0
  %621 = vmatprep.subr.bf16.mxu0 0
  %622 = vmatpush1.bf16.msra.mxu0 0
  %623 = vmatprep.subr.bf16.mxu0 0
  %624 = vmatpush1.bf16.msra.mxu0 0
  %625 = vmatprep.subr.bf16.mxu0 0
  %626 = vmatpush1.bf16.msra.mxu0 0
  %627 = vmatprep.subr.bf16.mxu0 0
  %628 = vmatpush1.bf16.msra.mxu0 0
  %629 = vmatprep.subr.bf16.mxu0 0
  %630 = vmatpush1.bf16.msra.mxu0 0
  %631 = vmatprep.subr.bf16.mxu0 0
  %632 = vmatpush1.bf16.msra.mxu0 0
  %633 = vmatprep.subr.bf16.mxu0 0
  %634 = vmatpush1.bf16.msra.mxu0 0
  %635 = vmatprep.subr.bf16.mxu0 0
  %636 = vmatpush1.bf16.msra.mxu0 0
  %637 = vmatprep.subr.bf16.mxu0 0
  %638 = vmatpush1.bf16.msra.mxu0 0
  %639 = vmatprep.subr.bf16.mxu0 0
  %640 = vmatpush1.bf16.msra.mxu0 0
  %641 = vmatprep.subr.bf16.mxu0 0
  %642 = vmatpush1.bf16.msra.mxu0 0
  %643 = vmatprep.subr.bf16.mxu0 0
  %644 = vmatpush1.bf16.msra.mxu0 0
  %645 = vmatprep.mubr.bf16.mxu0 0
  %646 = vmatmul.mubr.bf16.gmra.mrb[0].mxu0 %v611
  %v647 = vpop.f32.mrb[0].mxu0
  %v648 = vadd.f32 0.0, %v647
  %v649 = vpop.f32.mrb[0].mxu0
  %v650 = vadd.f32 0.0, %v649
  %v651 = vpop.f32.mrb[0].mxu0
  %v652 = vpop.f32.mrb[0].mxu0
  %653 = vdwg.mxu0
  %v654 = vpack.c.bf16 %v505, %v505
  %656 = vrot.lane.b32.xlu0 %v654, 32
  %v657 = vpop.permute.xlu0 %656
  %v659 = vsel %vm169, %v657, 0
  %661 = vmatprep.subr.bf16.mxu0 0
  %662 = vmatpush1.bf16.msra.mxu0 %v48
  %663 = vmatprep.subr.bf16.mxu0 0
  %664 = vmatpush1.bf16.msra.mxu0 %v49
  %665 = vmatprep.subr.bf16.mxu0 0
  %666 = vmatpush1.bf16.msra.mxu0 0
  %667 = vmatprep.subr.bf16.mxu0 0
  %668 = vmatpush1.bf16.msra.mxu0 0
  %669 = vmatprep.subr.bf16.mxu0 0
  %670 = vmatpush1.bf16.msra.mxu0 0
  %671 = vmatprep.subr.bf16.mxu0 0
  %672 = vmatpush1.bf16.msra.mxu0 0
  %673 = vmatprep.subr.bf16.mxu0 0
  %674 = vmatpush1.bf16.msra.mxu0 0
  %675 = vmatprep.subr.bf16.mxu0 0
  %676 = vmatpush1.bf16.msra.mxu0 0
  %677 = vmatprep.subr.bf16.mxu0 0
  %678 = vmatpush1.bf16.msra.mxu0 0
  %679 = vmatprep.subr.bf16.mxu0 0
  %680 = vmatpush1.bf16.msra.mxu0 0
  %681 = vmatprep.subr.bf16.mxu0 0
  %682 = vmatpush1.bf16.msra.mxu0 0
  %683 = vmatprep.subr.bf16.mxu0 0
  %684 = vmatpush1.bf16.msra.mxu0 0
  %685 = vmatprep.subr.bf16.mxu0 0
  %686 = vmatpush1.bf16.msra.mxu0 0
  %687 = vmatprep.subr.bf16.mxu0 0
  %688 = vmatpush1.bf16.msra.mxu0 0
  %689 = vmatprep.subr.bf16.mxu0 0
  %690 = vmatpush1.bf16.msra.mxu0 0
  %691 = vmatprep.subr.bf16.mxu0 0
  %692 = vmatpush1.bf16.msra.mxu0 0
  %693 = vmatprep.mubr.bf16.mxu0 0
  %694 = vmatmul.mubr.bf16.gmra.mrb[0].mxu0 %v659
  %v695 = vpop.f32.mrb[0].mxu0
  %v696 = vadd.f32 0.0, %v695
  %v697 = vpop.f32.mrb[0].mxu0
  %v698 = vpop.f32.mrb[0].mxu0
  %v699 = vpop.f32.mrb[0].mxu0
  %700 = vdwg.mxu0
  %v701 = vadd.f32 %v650, %v696
  %v702 = vadd.f32 %v701, %v63
  %v703 = vxor.u32 %v702, 2147483648
  %v704 = vmul.f32 %v703, 1.442695
  %v705 = vpow.pop %v704
  %v706 = vadd.f32 %v705, 1.0
  %v707 = vrcp.pop %v706
  %v708 = vmul.f32 1.0, %v707
  %v709 = vmul.f32 %v708, 2.0
  %v710 = vsub.f32 %v709, 1.0
  %v711 = vmul.f32 %v708, %v499
  %713 = vrot.lane.b32.xlu0 %v710, 64
  %v714 = vpop.permute.xlu0 %713
  %v716 = vmul.f32 %v708, %v714
  %718 = vrot.lane.b32.xlu0 %v716, 32
  %v719 = vpop.permute.xlu0 %718
  %v721 = vadd.f32 %v711, %v719
  %v722 = vtanh.pop %v721
  %724 = vrot.lane.b32.xlu0 %v722, 64
  %v725 = vpop.permute.xlu0 %724
  %v727 = vmul.f32 %v708, %v725
  %728 = vrot.lane.b32.xlu0 %v65, 104
  %v729 = vpop.permute.xlu0 %728
  %v730 = vsel %vm66, %v729, 0
  %732 = vmatprep.subr.mxu0 0.0
  %733 = vmatpush1.msra.mxu0 %v50
  %734 = vmatprep.subr.mxu0 0.0
  %735 = vmatpush1.msra.mxu0 0.0
  %736 = vmatprep.subr.mxu0 0.0
  %737 = vmatpush1.msra.mxu0 0.0
  %738 = vmatprep.subr.mxu0 0.0
  %739 = vmatpush1.msra.mxu0 0.0
  %740 = vmatprep.subr.mxu0 0.0
  %741 = vmatpush1.msra.mxu0 0.0
  %742 = vmatprep.subr.mxu0 0.0
  %743 = vmatpush1.msra.mxu0 0.0
  %744 = vmatprep.subr.mxu0 0.0
  %745 = vmatpush1.msra.mxu0 0.0
  %746 = vmatprep.subr.mxu0 0.0
  %747 = vmatpush1.msra.mxu0 0.0
  %748 = vmatprep.subr.mxu0 0.0
  %749 = vmatpush1.msra.mxu0 0.0
  %750 = vmatprep.subr.mxu0 0.0
  %751 = vmatpush1.msra.mxu0 0.0
  %752 = vmatprep.subr.mxu0 0.0
  %753 = vmatpush1.msra.mxu0 0.0
  %754 = vmatprep.subr.mxu0 0.0
  %755 = vmatpush1.msra.mxu0 0.0
  %756 = vmatprep.subr.mxu0 0.0
  %757 = vmatpush1.msra.mxu0 0.0
  %758 = vmatprep.subr.mxu0 0.0
  %759 = vmatpush1.msra.mxu0 0.0
  %760 = vmatprep.subr.mxu0 0.0
  %761 = vmatpush1.msra.mxu0 0.0
  %762 = vmatprep.subr.mxu0 0.0
  %763 = vmatpush1.msra.mxu0 0.0
  %764 = vmatprep.subr.mxu0 0.0
  %765 = vmatpush1.msra.mxu0 0.0
  %766 = vmatprep.subr.mxu0 0.0
  %767 = vmatpush1.msra.mxu0 0.0
  %768 = vmatprep.subr.mxu0 0.0
  %769 = vmatpush1.msra.mxu0 0.0
  %770 = vmatprep.subr.mxu0 0.0
  %771 = vmatpush1.msra.mxu0 0.0
  %772 = vmatprep.subr.mxu0 0.0
  %773 = vmatpush1.msra.mxu0 0.0
  %774 = vmatprep.subr.mxu0 0.0
  %775 = vmatpush1.msra.mxu0 0.0
  %776 = vmatprep.subr.mxu0 0.0
  %777 = vmatpush1.msra.mxu0 0.0
  %778 = vmatprep.subr.mxu0 0.0
  %779 = vmatpush1.msra.mxu0 0.0
  %780 = vmatprep.subr.mxu0 0.0
  %781 = vmatpush1.msra.mxu0 0.0
  %782 = vmatprep.subr.mxu0 0.0
  %783 = vmatpush1.msra.mxu0 0.0
  %784 = vmatprep.subr.mxu0 0.0
  %785 = vmatpush1.msra.mxu0 0.0
  %786 = vmatprep.subr.mxu0 0.0
  %787 = vmatpush1.msra.mxu0 0.0
  %788 = vmatprep.subr.mxu0 0.0
  %789 = vmatpush1.msra.mxu0 0.0
  %790 = vmatprep.subr.mxu0 0.0
  %791 = vmatpush1.msra.mxu0 0.0
  %792 = vmatprep.subr.mxu0 0.0
  %793 = vmatpush1.msra.mxu0 0.0
  %794 = vmatprep.subr.mxu0 0.0
  %795 = vmatpush1.msra.mxu0 0.0
  %796 = vmatprep.mubr.f32.mxu0 0.0
  %797 = vmatmul.mubr.f32.gmra.mrb[0].mxu0 %v730
  %v798 = vpop.f32.mrb[0].mxu0
  %v799 = vadd.f32 %v56, %v798
  %v800 = vpop.f32.mrb[0].mxu0
  %801 = vdwg.mxu0
  %v802 = vadd.f32 %v648, %v799
  %v803 = vxor.u32 %v802, 2147483648
  %v804 = vmul.f32 %v803, 1.442695
  %v805 = vpow.pop %v804
  %v806 = vadd.f32 %v805, 1.0
  %v807 = vrcp.pop %v806
  %v808 = vmul.f32 1.0, %v807
  %v809 = vmul.f32 %v808, 2.0
  %v810 = vsub.f32 %v809, 1.0
  %v811 = vmul.f32 %v808, %v599
  %813 = vrot.lane.b32.xlu0 %v810, 64
  %v814 = vpop.permute.xlu0 %813
  %v816 = vmul.f32 %v808, %v814
  %818 = vrot.lane.b32.xlu0 %v816, 32
  %v819 = vpop.permute.xlu0 %818
  %v821 = vadd.f32 %v811, %v819
  %v822 = vtanh.pop %v821
  %824 = vrot.lane.b32.xlu0 %v822, 64
  %v825 = vpop.permute.xlu0 %824
  %v827 = vmul.f32 %v808, %v825
  %v828 = vpack.c.bf16 %v827, %v827
  %830 = vrot.lane.b32.xlu0 %v828, 32
  %v831 = vpop.permute.xlu0 %830
  %v833 = vsel %vm169, %v831, 0
  %835 = vmatprep.subr.bf16.mxu0 %v41
  %836 = vmatpush1.bf16.msra.mxu0 %v40
  %837 = vmatprep.subr.bf16.mxu0 %v43
  %838 = vmatpush1.bf16.msra.mxu0 %v42
  %839 = vmatprep.subr.bf16.mxu0 0
  %840 = vmatpush1.bf16.msra.mxu0 0
  %841 = vmatprep.subr.bf16.mxu0 0
  %842 = vmatpush1.bf16.msra.mxu0 0
  %843 = vmatprep.subr.bf16.mxu0 0
  %844 = vmatpush1.bf16.msra.mxu0 0
  %845 = vmatprep.subr.bf16.mxu0 0
  %846 = vmatpush1.bf16.msra.mxu0 0
  %847 = vmatprep.subr.bf16.mxu0 0
  %848 = vmatpush1.bf16.msra.mxu0 0
  %849 = vmatprep.subr.bf16.mxu0 0
  %850 = vmatpush1.bf16.msra.mxu0 0
  %851 = vmatprep.subr.bf16.mxu0 0
  %852 = vmatpush1.bf16.msra.mxu0 0
  %853 = vmatprep.subr.bf16.mxu0 0
  %854 = vmatpush1.bf16.msra.mxu0 0
  %855 = vmatprep.subr.bf16.mxu0 0
  %856 = vmatpush1.bf16.msra.mxu0 0
  %857 = vmatprep.subr.bf16.mxu0 0
  %858 = vmatpush1.bf16.msra.mxu0 0
  %859 = vmatprep.subr.bf16.mxu0 0
  %860 = vmatpush1.bf16.msra.mxu0 0
  %861 = vmatprep.subr.bf16.mxu0 0
  %862 = vmatpush1.bf16.msra.mxu0 0
  %863 = vmatprep.subr.bf16.mxu0 0
  %864 = vmatpush1.bf16.msra.mxu0 0
  %865 = vmatprep.subr.bf16.mxu0 0
  %866 = vmatpush1.bf16.msra.mxu0 0
  %867 = vmatprep.mubr.bf16.mxu0 0
  %868 = vmatmul.mubr.bf16.gmra.mrb[0].mxu0 %v833
  %v869 = vpop.f32.mrb[0].mxu0
  %v870 = vadd.f32 0.0, %v869
  %v871 = vpop.f32.mrb[0].mxu0
  %v872 = vadd.f32 0.0, %v871
  %v873 = vpop.f32.mrb[0].mxu0
  %v874 = vpop.f32.mrb[0].mxu0
  %875 = vdwg.mxu0
  %v876 = vpack.c.bf16 %v727, %v727
  %878 = vrot.lane.b32.xlu0 %v876, 32
  %v879 = vpop.permute.xlu0 %878
  %v881 = vsel %vm169, %v879, 0
  %883 = vmatprep.subr.bf16.mxu0 0
  %884 = vmatpush1.bf16.msra.mxu0 %v48
  %885 = vmatprep.subr.bf16.mxu0 0
  %886 = vmatpush1.bf16.msra.mxu0 %v49
  %887 = vmatprep.subr.bf16.mxu0 0
  %888 = vmatpush1.bf16.msra.mxu0 0
  %889 = vmatprep.subr.bf16.mxu0 0
  %890 = vmatpush1.bf16.msra.mxu0 0
  %891 = vmatprep.subr.bf16.mxu0 0
  %892 = vmatpush1.bf16.msra.mxu0 0
  %893 = vmatprep.subr.bf16.mxu0 0
  %894 = vmatpush1.bf16.msra.mxu0 0
  %895 = vmatprep.subr.bf16.mxu0 0
  %896 = vmatpush1.bf16.msra.mxu0 0
  %897 = vmatprep.subr.bf16.mxu0 0
  %898 = vmatpush1.bf16.msra.mxu0 0
  %899 = vmatprep.subr.bf16.mxu0 0
  %900 = vmatpush1.bf16.msra.mxu0 0
  %901 = vmatprep.subr.bf16.mxu0 0
  %902 = vmatpush1.bf16.msra.mxu0 0
  %903 = vmatprep.subr.bf16.mxu0 0
  %904 = vmatpush1.bf16.msra.mxu0 0
  %905 = vmatprep.subr.bf16.mxu0 0
  %906 = vmatpush1.bf16.msra.mxu0 0
  %907 = vmatprep.subr.bf16.mxu0 0
  %908 = vmatpush1.bf16.msra.mxu0 0
  %909 = vmatprep.subr.bf16.mxu0 0
  %910 = vmatpush1.bf16.msra.mxu0 0
  %911 = vmatprep.subr.bf16.mxu0 0
  %912 = vmatpush1.bf16.msra.mxu0 0
  %913 = vmatprep.subr.bf16.mxu0 0
  %914 = vmatpush1.bf16.msra.mxu0 0
  %915 = vmatprep.mubr.bf16.mxu0 0
  %916 = vmatmul.mubr.bf16.gmra.mrb[0].mxu0 %v881
  %v917 = vpop.f32.mrb[0].mxu0
  %v918 = vadd.f32 0.0, %v917
  %v919 = vpop.f32.mrb[0].mxu0
  %v920 = vpop.f32.mrb[0].mxu0
  %v921 = vpop.f32.mrb[0].mxu0
  %922 = vdwg.mxu0
  %v923 = vadd.f32 %v872, %v918
  %v924 = vadd.f32 %v923, %v63
  %v925 = vxor.u32 %v924, 2147483648
  %v926 = vmul.f32 %v925, 1.442695
  %v927 = vpow.pop %v926
  %v928 = vadd.f32 %v927, 1.0
  %v929 = vrcp.pop %v928
  %v930 = vmul.f32 1.0, %v929
  %v931 = vmul.f32 %v930, 2.0
  %v932 = vsub.f32 %v931, 1.0
  %v933 = vmul.f32 %v930, %v721
  %935 = vrot.lane.b32.xlu0 %v932, 64
  %v936 = vpop.permute.xlu0 %935
  %v938 = vmul.f32 %v930, %v936
  %940 = vrot.lane.b32.xlu0 %v938, 32
  %v941 = vpop.permute.xlu0 %940
  %v943 = vadd.f32 %v933, %v941
  %v944 = vtanh.pop %v943
  %946 = vrot.lane.b32.xlu0 %v944, 64
  %v947 = vpop.permute.xlu0 %946
  %v949 = vmul.f32 %v930, %v947
  %950 = vrot.lane.b32.xlu0 %v65, 96
  %v951 = vpop.permute.xlu0 %950
  %v952 = vsel %vm66, %v951, 0
  %954 = vmatprep.subr.mxu0 0.0
  %955 = vmatpush1.msra.mxu0 %v50
  %956 = vmatprep.subr.mxu0 0.0
  %957 = vmatpush1.msra.mxu0 0.0
  %958 = vmatprep.subr.mxu0 0.0
  %959 = vmatpush1.msra.mxu0 0.0
  %960 = vmatprep.subr.mxu0 0.0
  %961 = vmatpush1.msra.mxu0 0.0
  %962 = vmatprep.subr.mxu0 0.0
  %963 = vmatpush1.msra.mxu0 0.0
  %964 = vmatprep.subr.mxu0 0.0
  %965 = vmatpush1.msra.mxu0 0.0
  %966 = vmatprep.subr.mxu0 0.0
  %967 = vmatpush1.msra.mxu0 0.0
  %968 = vmatprep.subr.mxu0 0.0
  %969 = vmatpush1.msra.mxu0 0.0
  %970 = vmatprep.subr.mxu0 0.0
  %971 = vmatpush1.msra.mxu0 0.0
  %972 = vmatprep.subr.mxu0 0.0
  %973 = vmatpush1.msra.mxu0 0.0
  %974 = vmatprep.subr.mxu0 0.0
  %975 = vmatpush1.msra.mxu0 0.0
  %976 = vmatprep.subr.mxu0 0.0
  %977 = vmatpush1.msra.mxu0 0.0
  %978 = vmatprep.subr.mxu0 0.0
  %979 = vmatpush1.msra.mxu0 0.0
  %980 = vmatprep.subr.mxu0 0.0
  %981 = vmatpush1.msra.mxu0 0.0
  %982 = vmatprep.subr.mxu0 0.0
  %983 = vmatpush1.msra.mxu0 0.0
  %984 = vmatprep.subr.mxu0 0.0
  %985 = vmatpush1.msra.mxu0 0.0
  %986 = vmatprep.subr.mxu0 0.0
  %987 = vmatpush1.msra.mxu0 0.0
  %988 = vmatprep.subr.mxu0 0.0
  %989 = vmatpush1.msra.mxu0 0.0
  %990 = vmatprep.subr.mxu0 0.0
  %991 = vmatpush1.msra.mxu0 0.0
  %992 = vmatprep.subr.mxu0 0.0
  %993 = vmatpush1.msra.mxu0 0.0
  %994 = vmatprep.subr.mxu0 0.0
  %995 = vmatpush1.msra.mxu0 0.0
  %996 = vmatprep.subr.mxu0 0.0
  %997 = vmatpush1.msra.mxu0 0.0
  %998 = vmatprep.subr.mxu0 0.0
  %999 = vmatpush1.msra.mxu0 0.0
  %1000 = vmatprep.subr.mxu0 0.0
  %1001 = vmatpush1.msra.mxu0 0.0
  %1002 = vmatprep.subr.mxu0 0.0
  %1003 = vmatpush1.msra.mxu0 0.0
  %1004 = vmatprep.subr.mxu0 0.0
  %1005 = vmatpush1.msra.mxu0 0.0
  %1006 = vmatprep.subr.mxu0 0.0
  %1007 = vmatpush1.msra.mxu0 0.0
  %1008 = vmatprep.subr.mxu0 0.0
  %1009 = vmatpush1.msra.mxu0 0.0
  %1010 = vmatprep.subr.mxu0 0.0
  %1011 = vmatpush1.msra.mxu0 0.0
  %1012 = vmatprep.subr.mxu0 0.0
  %1013 = vmatpush1.msra.mxu0 0.0
  %1014 = vmatprep.subr.mxu0 0.0
  %1015 = vmatpush1.msra.mxu0 0.0
  %1016 = vmatprep.subr.mxu0 0.0
  %1017 = vmatpush1.msra.mxu0 0.0
  %1018 = vmatprep.mubr.f32.mxu0 0.0
  %1019 = vmatmul.mubr.f32.gmra.mrb[0].mxu0 %v952
  %v1020 = vpop.f32.mrb[0].mxu0
  %v1021 = vadd.f32 %v56, %v1020
  %v1022 = vpop.f32.mrb[0].mxu0
  %1023 = vdwg.mxu0
  %v1024 = vadd.f32 %v870, %v1021
  %v1025 = vxor.u32 %v1024, 2147483648
  %v1026 = vmul.f32 %v1025, 1.442695
  %v1027 = vpow.pop %v1026
  %v1028 = vadd.f32 %v1027, 1.0
  %v1029 = vrcp.pop %v1028
  %v1030 = vmul.f32 1.0, %v1029
  %v1031 = vmul.f32 %v1030, 2.0
  %v1032 = vsub.f32 %v1031, 1.0
  %v1033 = vmul.f32 %v1030, %v821
  %1035 = vrot.lane.b32.xlu0 %v1032, 64
  %v1036 = vpop.permute.xlu0 %1035
  %v1038 = vmul.f32 %v1030, %v1036
  %1040 = vrot.lane.b32.xlu0 %v1038, 32
  %v1041 = vpop.permute.xlu0 %1040
  %v1043 = vadd.f32 %v1033, %v1041
  %v1044 = vtanh.pop %v1043
  %1046 = vrot.lane.b32.xlu0 %v1044, 64
  %v1047 = vpop.permute.xlu0 %1046
  %v1049 = vmul.f32 %v1030, %v1047
  %v1050 = vpack.c.bf16 %v1049, %v1049
  %1052 = vrot.lane.b32.xlu0 %v1050, 32
  %v1053 = vpop.permute.xlu0 %1052
  %v1055 = vsel %vm169, %v1053, 0
  %1057 = vmatprep.subr.bf16.mxu0 %v41
  %1058 = vmatpush1.bf16.msra.mxu0 %v40
  %1059 = vmatprep.subr.bf16.mxu0 %v43
  %1060 = vmatpush1.bf16.msra.mxu0 %v42
  %1061 = vmatprep.subr.bf16.mxu0 0
  %1062 = vmatpush1.bf16.msra.mxu0 0
  %1063 = vmatprep.subr.bf16.mxu0 0
  %1064 = vmatpush1.bf16.msra.mxu0 0
  %1065 = vmatprep.subr.bf16.mxu0 0
  %1066 = vmatpush1.bf16.msra.mxu0 0
  %1067 = vmatprep.subr.bf16.mxu0 0
  %1068 = vmatpush1.bf16.msra.mxu0 0
  %1069 = vmatprep.subr.bf16.mxu0 0
  %1070 = vmatpush1.bf16.msra.mxu0 0
  %1071 = vmatprep.subr.bf16.mxu0 0
  %1072 = vmatpush1.bf16.msra.mxu0 0
  %1073 = vmatprep.subr.bf16.mxu0 0
  %1074 = vmatpush1.bf16.msra.mxu0 0
  %1075 = vmatprep.subr.bf16.mxu0 0
  %1076 = vmatpush1.bf16.msra.mxu0 0
  %1077 = vmatprep.subr.bf16.mxu0 0
  %1078 = vmatpush1.bf16.msra.mxu0 0
  %1079 = vmatprep.subr.bf16.mxu0 0
  %1080 = vmatpush1.bf16.msra.mxu0 0
  %1081 = vmatprep.subr.bf16.mxu0 0
  %1082 = vmatpush1.bf16.msra.mxu0 0
  %1083 = vmatprep.subr.bf16.mxu0 0
  %1084 = vmatpush1.bf16.msra.mxu0 0
  %1085 = vmatprep.subr.bf16.mxu0 0
  %1086 = vmatpush1.bf16.msra.mxu0 0
  %1087 = vmatprep.subr.bf16.mxu0 0
  %1088 = vmatpush1.bf16.msra.mxu0 0
  %1089 = vmatprep.mubr.bf16.mxu0 0
  %1090 = vmatmul.mubr.bf16.gmra.mrb[0].mxu0 %v1055
  %v1091 = vpop.f32.mrb[0].mxu0
  %v1092 = vadd.f32 0.0, %v1091
  %v1093 = vpop.f32.mrb[0].mxu0
  %v1094 = vadd.f32 0.0, %v1093
  %v1095 = vpop.f32.mrb[0].mxu0
  %v1096 = vpop.f32.mrb[0].mxu0
  %1097 = vdwg.mxu0
  %v1098 = vpack.c.bf16 %v949, %v949
  %1100 = vrot.lane.b32.xlu0 %v1098, 32
  %v1101 = vpop.permute.xlu0 %1100
  %v1103 = vsel %vm169, %v1101, 0
  %1105 = vmatprep.subr.bf16.mxu0 0
  %1106 = vmatpush1.bf16.msra.mxu0 %v48
  %1107 = vmatprep.subr.bf16.mxu0 0
  %1108 = vmatpush1.bf16.msra.mxu0 %v49
  %1109 = vmatprep.subr.bf16.mxu0 0
  %1110 = vmatpush1.bf16.msra.mxu0 0
  %1111 = vmatprep.subr.bf16.mxu0 0
  %1112 = vmatpush1.bf16.msra.mxu0 0
  %1113 = vmatprep.subr.bf16.mxu0 0
  %1114 = vmatpush1.bf16.msra.mxu0 0
  %1115 = vmatprep.subr.bf16.mxu0 0
  %1116 = vmatpush1.bf16.msra.mxu0 0
  %1117 = vmatprep.subr.bf16.mxu0 0
  %1118 = vmatpush1.bf16.msra.mxu0 0
  %1119 = vmatprep.subr.bf16.mxu0 0
  %1120 = vmatpush1.bf16.msra.mxu0 0
  %1121 = vmatprep.subr.bf16.mxu0 0
  %1122 = vmatpush1.bf16.msra.mxu0 0
  %1123 = vmatprep.subr.bf16.mxu0 0
  %1124 = vmatpush1.bf16.msra.mxu0 0
  %1125 = vmatprep.subr.bf16.mxu0 0
  %1126 = vmatpush1.bf16.msra.mxu0 0
  %1127 = vmatprep.subr.bf16.mxu0 0
  %1128 = vmatpush1.bf16.msra.mxu0 0
  %1129 = vmatprep.subr.bf16.mxu0 0
  %1130 = vmatpush1.bf16.msra.mxu0 0
  %1131 = vmatprep.subr.bf16.mxu0 0
  %1132 = vmatpush1.bf16.msra.mxu0 0
  %1133 = vmatprep.subr.bf16.mxu0 0
  %1134 = vmatpush1.bf16.msra.mxu0 0
  %1135 = vmatprep.subr.bf16.mxu0 0
  %1136 = vmatpush1.bf16.msra.mxu0 0
  %1137 = vmatprep.mubr.bf16.mxu0 0
  %1138 = vmatmul.mubr.bf16.gmra.mrb[0].mxu0 %v1103
  %v1139 = vpop.f32.mrb[0].mxu0
  %v1140 = vadd.f32 0.0, %v1139
  %v1141 = vpop.f32.mrb[0].mxu0
  %v1142 = vpop.f32.mrb[0].mxu0
  %v1143 = vpop.f32.mrb[0].mxu0
  %1144 = vdwg.mxu0
  %v1145 = vadd.f32 %v1094, %v1140
  %v1146 = vadd.f32 %v1145, %v63
  %v1147 = vxor.u32 %v1146, 2147483648
  %v1148 = vmul.f32 %v1147, 1.442695
  %v1149 = vpow.pop %v1148
  %v1150 = vadd.f32 %v1149, 1.0
  %v1151 = vrcp.pop %v1150
  %v1152 = vmul.f32 1.0, %v1151
  %v1153 = vmul.f32 %v1152, 2.0
  %v1154 = vsub.f32 %v1153, 1.0
  %v1155 = vmul.f32 %v1152, %v943
  %1157 = vrot.lane.b32.xlu0 %v1154, 64
  %v1158 = vpop.permute.xlu0 %1157
  %v1160 = vmul.f32 %v1152, %v1158
  %1162 = vrot.lane.b32.xlu0 %v1160, 32
  %v1163 = vpop.permute.xlu0 %1162
  %v1165 = vadd.f32 %v1155, %v1163
  %v1166 = vtanh.pop %v1165
  %1168 = vrot.lane.b32.xlu0 %v1166, 64
  %v1169 = vpop.permute.xlu0 %1168
  %v1171 = vmul.f32 %v1152, %v1169
  %1172 = vrot.lane.b32.xlu0 %v65, 88
  %v1173 = vpop.permute.xlu0 %1172
  %v1174 = vsel %vm66, %v1173, 0
  %1176 = vmatprep.subr.mxu0 0.0
  %1177 = vmatpush1.msra.mxu0 %v50
  %1178 = vmatprep.subr.mxu0 0.0
  %1179 = vmatpush1.msra.mxu0 0.0
  %1180 = vmatprep.subr.mxu0 0.0
  %1181 = vmatpush1.msra.mxu0 0.0
  %1182 = vmatprep.subr.mxu0 0.0
  %1183 = vmatpush1.msra.mxu0 0.0
  %1184 = vmatprep.subr.mxu0 0.0
  %1185 = vmatpush1.msra.mxu0 0.0
  %1186 = vmatprep.subr.mxu0 0.0
  %1187 = vmatpush1.msra.mxu0 0.0
  %1188 = vmatprep.subr.mxu0 0.0
  %1189 = vmatpush1.msra.mxu0 0.0
  %1190 = vmatprep.subr.mxu0 0.0
  %1191 = vmatpush1.msra.mxu0 0.0
  %1192 = vmatprep.subr.mxu0 0.0
  %1193 = vmatpush1.msra.mxu0 0.0
  %1194 = vmatprep.subr.mxu0 0.0
  %1195 = vmatpush1.msra.mxu0 0.0
  %1196 = vmatprep.subr.mxu0 0.0
  %1197 = vmatpush1.msra.mxu0 0.0
  %1198 = vmatprep.subr.mxu0 0.0
  %1199 = vmatpush1.msra.mxu0 0.0
  %1200 = vmatprep.subr.mxu0 0.0
  %1201 = vmatpush1.msra.mxu0 0.0
  %1202 = vmatprep.subr.mxu0 0.0
  %1203 = vmatpush1.msra.mxu0 0.0
  %1204 = vmatprep.subr.mxu0 0.0
  %1205 = vmatpush1.msra.mxu0 0.0
  %1206 = vmatprep.subr.mxu0 0.0
  %1207 = vmatpush1.msra.mxu0 0.0
  %1208 = vmatprep.subr.mxu0 0.0
  %1209 = vmatpush1.msra.mxu0 0.0
  %1210 = vmatprep.subr.mxu0 0.0
  %1211 = vmatpush1.msra.mxu0 0.0
  %1212 = vmatprep.subr.mxu0 0.0
  %1213 = vmatpush1.msra.mxu0 0.0
  %1214 = vmatprep.subr.mxu0 0.0
  %1215 = vmatpush1.msra.mxu0 0.0
  %1216 = vmatprep.subr.mxu0 0.0
  %1217 = vmatpush1.msra.mxu0 0.0
  %1218 = vmatprep.subr.mxu0 0.0
  %1219 = vmatpush1.msra.mxu0 0.0
  %1220 = vmatprep.subr.mxu0 0.0
  %1221 = vmatpush1.msra.mxu0 0.0
  %1222 = vmatprep.subr.mxu0 0.0
  %1223 = vmatpush1.msra.mxu0 0.0
  %1224 = vmatprep.subr.mxu0 0.0
  %1225 = vmatpush1.msra.mxu0 0.0
  %1226 = vmatprep.subr.mxu0 0.0
  %1227 = vmatpush1.msra.mxu0 0.0
  %1228 = vmatprep.subr.mxu0 0.0
  %1229 = vmatpush1.msra.mxu0 0.0
  %1230 = vmatprep.subr.mxu0 0.0
  %1231 = vmatpush1.msra.mxu0 0.0
  %1232 = vmatprep.subr.mxu0 0.0
  %1233 = vmatpush1.msra.mxu0 0.0
  %1234 = vmatprep.subr.mxu0 0.0
  %1235 = vmatpush1.msra.mxu0 0.0
  %1236 = vmatprep.subr.mxu0 0.0
  %1237 = vmatpush1.msra.mxu0 0.0
  %1238 = vmatprep.subr.mxu0 0.0
  %1239 = vmatpush1.msra.mxu0 0.0
  %1240 = vmatprep.mubr.f32.mxu0 0.0
  %1241 = vmatmul.mubr.f32.gmra.mrb[0].mxu0 %v1174
  %v1242 = vpop.f32.mrb[0].mxu0
  %v1243 = vadd.f32 %v56, %v1242
  %v1244 = vpop.f32.mrb[0].mxu0
  %1245 = vdwg.mxu0
  %v1246 = vadd.f32 %v1092, %v1243
  %v1247 = vxor.u32 %v1246, 2147483648
  %v1248 = vmul.f32 %v1247, 1.442695
  %v1249 = vpow.pop %v1248
  %v1250 = vadd.f32 %v1249, 1.0
  %v1251 = vrcp.pop %v1250
  %v1252 = vmul.f32 1.0, %v1251
  %v1253 = vmul.f32 %v1252, 2.0
  %v1254 = vsub.f32 %v1253, 1.0
  %v1255 = vmul.f32 %v1252, %v1043
  %1257 = vrot.lane.b32.xlu0 %v1254, 64
  %v1258 = vpop.permute.xlu0 %1257
  %v1260 = vmul.f32 %v1252, %v1258
  %1262 = vrot.lane.b32.xlu0 %v1260, 32
  %v1263 = vpop.permute.xlu0 %1262
  %v1265 = vadd.f32 %v1255, %v1263
  %v1266 = vtanh.pop %v1265
  %1268 = vrot.lane.b32.xlu0 %v1266, 64
  %v1269 = vpop.permute.xlu0 %1268
  %v1271 = vmul.f32 %v1252, %v1269
  %v1272 = vpack.c.bf16 %v1271, %v1271
  %1274 = vrot.lane.b32.xlu0 %v1272, 32
  %v1275 = vpop.permute.xlu0 %1274
  %v1277 = vsel %vm169, %v1275, 0
  %1279 = vmatprep.subr.bf16.mxu0 %v41
  %1280 = vmatpush1.bf16.msra.mxu0 %v40
  %1281 = vmatprep.subr.bf16.mxu0 %v43
  %1282 = vmatpush1.bf16.msra.mxu0 %v42
  %1283 = vmatprep.subr.bf16.mxu0 0
  %1284 = vmatpush1.bf16.msra.mxu0 0
  %1285 = vmatprep.subr.bf16.mxu0 0
  %1286 = vmatpush1.bf16.msra.mxu0 0
  %1287 = vmatprep.subr.bf16.mxu0 0
  %1288 = vmatpush1.bf16.msra.mxu0 0
  %1289 = vmatprep.subr.bf16.mxu0 0
  %1290 = vmatpush1.bf16.msra.mxu0 0
  %1291 = vmatprep.subr.bf16.mxu0 0
  %1292 = vmatpush1.bf16.msra.mxu0 0
  %1293 = vmatprep.subr.bf16.mxu0 0
  %1294 = vmatpush1.bf16.msra.mxu0 0
  %1295 = vmatprep.subr.bf16.mxu0 0
  %1296 = vmatpush1.bf16.msra.mxu0 0
  %1297 = vmatprep.subr.bf16.mxu0 0
  %1298 = vmatpush1.bf16.msra.mxu0 0
  %1299 = vmatprep.subr.bf16.mxu0 0
  %1300 = vmatpush1.bf16.msra.mxu0 0
  %1301 = vmatprep.subr.bf16.mxu0 0
  %1302 = vmatpush1.bf16.msra.mxu0 0
  %1303 = vmatprep.subr.bf16.mxu0 0
  %1304 = vmatpush1.bf16.msra.mxu0 0
  %1305 = vmatprep.subr.bf16.mxu0 0
  %1306 = vmatpush1.bf16.msra.mxu0 0
  %1307 = vmatprep.subr.bf16.mxu0 0
  %1308 = vmatpush1.bf16.msra.mxu0 0
  %1309 = vmatprep.subr.bf16.mxu0 0
  %1310 = vmatpush1.bf16.msra.mxu0 0
  %1311 = vmatprep.mubr.bf16.mxu0 0
  %1312 = vmatmul.mubr.bf16.gmra.mrb[0].mxu0 %v1277
  %v1313 = vpop.f32.mrb[0].mxu0
  %v1314 = vadd.f32 0.0, %v1313
  %v1315 = vpop.f32.mrb[0].mxu0
  %v1316 = vadd.f32 0.0, %v1315
  %v1317 = vpop.f32.mrb[0].mxu0
  %v1318 = vpop.f32.mrb[0].mxu0
  %1319 = vdwg.mxu0
  %v1320 = vpack.c.bf16 %v1171, %v1171
  %1322 = vrot.lane.b32.xlu0 %v1320, 32
  %v1323 = vpop.permute.xlu0 %1322
  %v1325 = vsel %vm169, %v1323, 0
  %1327 = vmatprep.subr.bf16.mxu0 0
  %1328 = vmatpush1.bf16.msra.mxu0 %v48
  %1329 = vmatprep.subr.bf16.mxu0 0
  %1330 = vmatpush1.bf16.msra.mxu0 %v49
  %1331 = vmatprep.subr.bf16.mxu0 0
  %1332 = vmatpush1.bf16.msra.mxu0 0
  %1333 = vmatprep.subr.bf16.mxu0 0
  %1334 = vmatpush1.bf16.msra.mxu0 0
  %1335 = vmatprep.subr.bf16.mxu0 0
  %1336 = vmatpush1.bf16.msra.mxu0 0
  %1337 = vmatprep.subr.bf16.mxu0 0
  %1338 = vmatpush1.bf16.msra.mxu0 0
  %1339 = vmatprep.subr.bf16.mxu0 0
  %1340 = vmatpush1.bf16.msra.mxu0 0
  %1341 = vmatprep.subr.bf16.mxu0 0
  %1342 = vmatpush1.bf16.msra.mxu0 0
  %1343 = vmatprep.subr.bf16.mxu0 0
  %1344 = vmatpush1.bf16.msra.mxu0 0
  %1345 = vmatprep.subr.bf16.mxu0 0
  %1346 = vmatpush1.bf16.msra.mxu0 0
  %1347 = vmatprep.subr.bf16.mxu0 0
  %1348 = vmatpush1.bf16.msra.mxu0 0
  %1349 = vmatprep.subr.bf16.mxu0 0
  %1350 = vmatpush1.bf16.msra.mxu0 0
  %1351 = vmatprep.subr.bf16.mxu0 0
  %1352 = vmatpush1.bf16.msra.mxu0 0
  %1353 = vmatprep.subr.bf16.mxu0 0
  %1354 = vmatpush1.bf16.msra.mxu0 0
  %1355 = vmatprep.subr.bf16.mxu0 0
  %1356 = vmatpush1.bf16.msra.mxu0 0
  %1357 = vmatprep.subr.bf16.mxu0 0
  %1358 = vmatpush1.bf16.msra.mxu0 0
  %1359 = vmatprep.mubr.bf16.mxu0 0
  %1360 = vmatmul.mubr.bf16.gmra.mrb[0].mxu0 %v1325
  %v1361 = vpop.f32.mrb[0].mxu0
  %v1362 = vadd.f32 0.0, %v1361
  %v1363 = vpop.f32.mrb[0].mxu0
  %v1364 = vpop.f32.mrb[0].mxu0
  %v1365 = vpop.f32.mrb[0].mxu0
  %1366 = vdwg.mxu0
  %v1367 = vadd.f32 %v1316, %v1362
  %v1368 = vadd.f32 %v1367, %v63
  %v1369 = vxor.u32 %v1368, 2147483648
  %v1370 = vmul.f32 %v1369, 1.442695
  %v1371 = vpow.pop %v1370
  %v1372 = vadd.f32 %v1371, 1.0
  %v1373 = vrcp.pop %v1372
  %v1374 = vmul.f32 1.0, %v1373
  %v1375 = vmul.f32 %v1374, 2.0
  %v1376 = vsub.f32 %v1375, 1.0
  %v1377 = vmul.f32 %v1374, %v1165
  %1379 = vrot.lane.b32.xlu0 %v1376, 64
  %v1380 = vpop.permute.xlu0 %1379
  %v1382 = vmul.f32 %v1374, %v1380
  %1384 = vrot.lane.b32.xlu0 %v1382, 32
  %v1385 = vpop.permute.xlu0 %1384
  %v1387 = vadd.f32 %v1377, %v1385
  %v1388 = vtanh.pop %v1387
  %1390 = vrot.lane.b32.xlu0 %v1388, 64
  %v1391 = vpop.permute.xlu0 %1390
  %v1393 = vmul.f32 %v1374, %v1391
  %1394 = vrot.lane.b32.xlu0 %v65, 80
  %v1395 = vpop.permute.xlu0 %1394
  %v1396 = vsel %vm66, %v1395, 0
  %1398 = vmatprep.subr.mxu0 0.0
  %1399 = vmatpush1.msra.mxu0 %v50
  %1400 = vmatprep.subr.mxu0 0.0
  %1401 = vmatpush1.msra.mxu0 0.0
  %1402 = vmatprep.subr.mxu0 0.0
  %1403 = vmatpush1.msra.mxu0 0.0
  %1404 = vmatprep.subr.mxu0 0.0
  %1405 = vmatpush1.msra.mxu0 0.0
  %1406 = vmatprep.subr.mxu0 0.0
  %1407 = vmatpush1.msra.mxu0 0.0
  %1408 = vmatprep.subr.mxu0 0.0
  %1409 = vmatpush1.msra.mxu0 0.0
  %1410 = vmatprep.subr.mxu0 0.0
  %1411 = vmatpush1.msra.mxu0 0.0
  %1412 = vmatprep.subr.mxu0 0.0
  %1413 = vmatpush1.msra.mxu0 0.0
  %1414 = vmatprep.subr.mxu0 0.0
  %1415 = vmatpush1.msra.mxu0 0.0
  %1416 = vmatprep.subr.mxu0 0.0
  %1417 = vmatpush1.msra.mxu0 0.0
  %1418 = vmatprep.subr.mxu0 0.0
  %1419 = vmatpush1.msra.mxu0 0.0
  %1420 = vmatprep.subr.mxu0 0.0
  %1421 = vmatpush1.msra.mxu0 0.0
  %1422 = vmatprep.subr.mxu0 0.0
  %1423 = vmatpush1.msra.mxu0 0.0
  %1424 = vmatprep.subr.mxu0 0.0
  %1425 = vmatpush1.msra.mxu0 0.0
  %1426 = vmatprep.subr.mxu0 0.0
  %1427 = vmatpush1.msra.mxu0 0.0
  %1428 = vmatprep.subr.mxu0 0.0
  %1429 = vmatpush1.msra.mxu0 0.0
  %1430 = vmatprep.subr.mxu0 0.0
  %1431 = vmatpush1.msra.mxu0 0.0
  %1432 = vmatprep.subr.mxu0 0.0
  %1433 = vmatpush1.msra.mxu0 0.0
  %1434 = vmatprep.subr.mxu0 0.0
  %1435 = vmatpush1.msra.mxu0 0.0
  %1436 = vmatprep.subr.mxu0 0.0
  %1437 = vmatpush1.msra.mxu0 0.0
  %1438 = vmatprep.subr.mxu0 0.0
  %1439 = vmatpush1.msra.mxu0 0.0
  %1440 = vmatprep.subr.mxu0 0.0
  %1441 = vmatpush1.msra.mxu0 0.0
  %1442 = vmatprep.subr.mxu0 0.0
  %1443 = vmatpush1.msra.mxu0 0.0
  %1444 = vmatprep.subr.mxu0 0.0
  %1445 = vmatpush1.msra.mxu0 0.0
  %1446 = vmatprep.subr.mxu0 0.0
  %1447 = vmatpush1.msra.mxu0 0.0
  %1448 = vmatprep.subr.mxu0 0.0
  %1449 = vmatpush1.msra.mxu0 0.0
  %1450 = vmatprep.subr.mxu0 0.0
  %1451 = vmatpush1.msra.mxu0 0.0
  %1452 = vmatprep.subr.mxu0 0.0
  %1453 = vmatpush1.msra.mxu0 0.0
  %1454 = vmatprep.subr.mxu0 0.0
  %1455 = vmatpush1.msra.mxu0 0.0
  %1456 = vmatprep.subr.mxu0 0.0
  %1457 = vmatpush1.msra.mxu0 0.0
  %1458 = vmatprep.subr.mxu0 0.0
  %1459 = vmatpush1.msra.mxu0 0.0
  %1460 = vmatprep.subr.mxu0 0.0
  %1461 = vmatpush1.msra.mxu0 0.0
  %1462 = vmatprep.mubr.f32.mxu0 0.0
  %1463 = vmatmul.mubr.f32.gmra.mrb[0].mxu0 %v1396
  %v1464 = vpop.f32.mrb[0].mxu0
  %v1465 = vadd.f32 %v56, %v1464
  %v1466 = vpop.f32.mrb[0].mxu0
  %1467 = vdwg.mxu0
  %v1468 = vadd.f32 %v1314, %v1465
  %v1469 = vxor.u32 %v1468, 2147483648
  %v1470 = vmul.f32 %v1469, 1.442695
  %v1471 = vpow.pop %v1470
  %v1472 = vadd.f32 %v1471, 1.0
  %v1473 = vrcp.pop %v1472
  %v1474 = vmul.f32 1.0, %v1473
  %v1475 = vmul.f32 %v1474, 2.0
  %v1476 = vsub.f32 %v1475, 1.0
  %v1477 = vmul.f32 %v1474, %v1265
  %1479 = vrot.lane.b32.xlu0 %v1476, 64
  %v1480 = vpop.permute.xlu0 %1479
  %v1482 = vmul.f32 %v1474, %v1480
  %1484 = vrot.lane.b32.xlu0 %v1482, 32
  %v1485 = vpop.permute.xlu0 %1484
  %v1487 = vadd.f32 %v1477, %v1485
  %v1488 = vtanh.pop %v1487
  %1490 = vrot.lane.b32.xlu0 %v1488, 64
  %v1491 = vpop.permute.xlu0 %1490
  %v1493 = vmul.f32 %v1474, %v1491
  %v1494 = vpack.c.bf16 %v1493, %v1493
  %1496 = vrot.lane.b32.xlu0 %v1494, 32
  %v1497 = vpop.permute.xlu0 %1496
  %v1499 = vsel %vm169, %v1497, 0
  %1501 = vmatprep.subr.bf16.mxu0 %v41
  %1502 = vmatpush1.bf16.msra.mxu0 %v40
  %1503 = vmatprep.subr.bf16.mxu0 %v43
  %1504 = vmatpush1.bf16.msra.mxu0 %v42
  %1505 = vmatprep.subr.bf16.mxu0 0
  %1506 = vmatpush1.bf16.msra.mxu0 0
  %1507 = vmatprep.subr.bf16.mxu0 0
  %1508 = vmatpush1.bf16.msra.mxu0 0
  %1509 = vmatprep.subr.bf16.mxu0 0
  %1510 = vmatpush1.bf16.msra.mxu0 0
  %1511 = vmatprep.subr.bf16.mxu0 0
  %1512 = vmatpush1.bf16.msra.mxu0 0
  %1513 = vmatprep.subr.bf16.mxu0 0
  %1514 = vmatpush1.bf16.msra.mxu0 0
  %1515 = vmatprep.subr.bf16.mxu0 0
  %1516 = vmatpush1.bf16.msra.mxu0 0
  %1517 = vmatprep.subr.bf16.mxu0 0
  %1518 = vmatpush1.bf16.msra.mxu0 0
  %1519 = vmatprep.subr.bf16.mxu0 0
  %1520 = vmatpush1.bf16.msra.mxu0 0
  %1521 = vmatprep.subr.bf16.mxu0 0
  %1522 = vmatpush1.bf16.msra.mxu0 0
  %1523 = vmatprep.subr.bf16.mxu0 0
  %1524 = vmatpush1.bf16.msra.mxu0 0
  %1525 = vmatprep.subr.bf16.mxu0 0
  %1526 = vmatpush1.bf16.msra.mxu0 0
  %1527 = vmatprep.subr.bf16.mxu0 0
  %1528 = vmatpush1.bf16.msra.mxu0 0
  %1529 = vmatprep.subr.bf16.mxu0 0
  %1530 = vmatpush1.bf16.msra.mxu0 0
  %1531 = vmatprep.subr.bf16.mxu0 0
  %1532 = vmatpush1.bf16.msra.mxu0 0
  %1533 = vmatprep.mubr.bf16.mxu0 0
  %1534 = vmatmul.mubr.bf16.gmra.mrb[0].mxu0 %v1499
  %v1535 = vpop.f32.mrb[0].mxu0
  %v1536 = vadd.f32 0.0, %v1535
  %v1537 = vpop.f32.mrb[0].mxu0
  %v1538 = vadd.f32 0.0, %v1537
  %v1539 = vpop.f32.mrb[0].mxu0
  %v1540 = vpop.f32.mrb[0].mxu0
  %1541 = vdwg.mxu0
  %v1542 = vpack.c.bf16 %v1393, %v1393
  %1544 = vrot.lane.b32.xlu0 %v1542, 32
  %v1545 = vpop.permute.xlu0 %1544
  %v1547 = vsel %vm169, %v1545, 0
  %1549 = vmatprep.subr.bf16.mxu0 0
  %1550 = vmatpush1.bf16.msra.mxu0 %v48
  %1551 = vmatprep.subr.bf16.mxu0 0
  %1552 = vmatpush1.bf16.msra.mxu0 %v49
  %1553 = vmatprep.subr.bf16.mxu0 0
  %1554 = vmatpush1.bf16.msra.mxu0 0
  %1555 = vmatprep.subr.bf16.mxu0 0
  %1556 = vmatpush1.bf16.msra.mxu0 0
  %1557 = vmatprep.subr.bf16.mxu0 0
  %1558 = vmatpush1.bf16.msra.mxu0 0
  %1559 = vmatprep.subr.bf16.mxu0 0
  %1560 = vmatpush1.bf16.msra.mxu0 0
  %1561 = vmatprep.subr.bf16.mxu0 0
  %1562 = vmatpush1.bf16.msra.mxu0 0
  %1563 = vmatprep.subr.bf16.mxu0 0
  %1564 = vmatpush1.bf16.msra.mxu0 0
  %1565 = vmatprep.subr.bf16.mxu0 0
  %1566 = vmatpush1.bf16.msra.mxu0 0
  %1567 = vmatprep.subr.bf16.mxu0 0
  %1568 = vmatpush1.bf16.msra.mxu0 0
  %1569 = vmatprep.subr.bf16.mxu0 0
  %1570 = vmatpush1.bf16.msra.mxu0 0
  %1571 = vmatprep.subr.bf16.mxu0 0
  %1572 = vmatpush1.bf16.msra.mxu0 0
  %1573 = vmatprep.subr.bf16.mxu0 0
  %1574 = vmatpush1.bf16.msra.mxu0 0
  %1575 = vmatprep.subr.bf16.mxu0 0
  %1576 = vmatpush1.bf16.msra.mxu0 0
  %1577 = vmatprep.subr.bf16.mxu0 0
  %1578 = vmatpush1.bf16.msra.mxu0 0
  %1579 = vmatprep.subr.bf16.mxu0 0
  %1580 = vmatpush1.bf16.msra.mxu0 0
  %1581 = vmatprep.mubr.bf16.mxu0 0
  %1582 = vmatmul.mubr.bf16.gmra.mrb[0].mxu0 %v1547
  %v1583 = vpop.f32.mrb[0].mxu0
  %v1584 = vadd.f32 0.0, %v1583
  %v1585 = vpop.f32.mrb[0].mxu0
  %v1586 = vpop.f32.mrb[0].mxu0
  %v1587 = vpop.f32.mrb[0].mxu0
  %1588 = vdwg.mxu0
  %v1589 = vadd.f32 %v1538, %v1584
  %v1590 = vadd.f32 %v1589, %v63
  %v1591 = vxor.u32 %v1590, 2147483648
  %v1592 = vmul.f32 %v1591, 1.442695
  %v1593 = vpow.pop %v1592
  %v1594 = vadd.f32 %v1593, 1.0
  %v1595 = vrcp.pop %v1594
  %v1596 = vmul.f32 1.0, %v1595
  %v1597 = vmul.f32 %v1596, 2.0
  %v1598 = vsub.f32 %v1597, 1.0
  %v1599 = vmul.f32 %v1596, %v1387
  %1601 = vrot.lane.b32.xlu0 %v1598, 64
  %v1602 = vpop.permute.xlu0 %1601
  %v1604 = vmul.f32 %v1596, %v1602
  %1606 = vrot.lane.b32.xlu0 %v1604, 32
  %v1607 = vpop.permute.xlu0 %1606
  %v1609 = vadd.f32 %v1599, %v1607
  %v1610 = vtanh.pop %v1609
  %1612 = vrot.lane.b32.xlu0 %v1610, 64
  %v1613 = vpop.permute.xlu0 %1612
  %v1615 = vmul.f32 %v1596, %v1613
  %1616 = vrot.lane.b32.xlu0 %v65, 72
  %v1617 = vpop.permute.xlu0 %1616
  %v1618 = vsel %vm66, %v1617, 0
  %1620 = vmatprep.subr.mxu0 0.0
  %1621 = vmatpush1.msra.mxu0 %v50
  %1622 = vmatprep.subr.mxu0 0.0
  %1623 = vmatpush1.msra.mxu0 0.0
  %1624 = vmatprep.subr.mxu0 0.0
  %1625 = vmatpush1.msra.mxu0 0.0
  %1626 = vmatprep.subr.mxu0 0.0
  %1627 = vmatpush1.msra.mxu0 0.0
  %1628 = vmatprep.subr.mxu0 0.0
  %1629 = vmatpush1.msra.mxu0 0.0
  %1630 = vmatprep.subr.mxu0 0.0
  %1631 = vmatpush1.msra.mxu0 0.0
  %1632 = vmatprep.subr.mxu0 0.0
  %1633 = vmatpush1.msra.mxu0 0.0
  %1634 = vmatprep.subr.mxu0 0.0
  %1635 = vmatpush1.msra.mxu0 0.0
  %1636 = vmatprep.subr.mxu0 0.0
  %1637 = vmatpush1.msra.mxu0 0.0
  %1638 = vmatprep.subr.mxu0 0.0
  %1639 = vmatpush1.msra.mxu0 0.0
  %1640 = vmatprep.subr.mxu0 0.0
  %1641 = vmatpush1.msra.mxu0 0.0
  %1642 = vmatprep.subr.mxu0 0.0
  %1643 = vmatpush1.msra.mxu0 0.0
  %1644 = vmatprep.subr.mxu0 0.0
  %1645 = vmatpush1.msra.mxu0 0.0
  %1646 = vmatprep.subr.mxu0 0.0
  %1647 = vmatpush1.msra.mxu0 0.0
  %1648 = vmatprep.subr.mxu0 0.0
  %1649 = vmatpush1.msra.mxu0 0.0
  %1650 = vmatprep.subr.mxu0 0.0
  %1651 = vmatpush1.msra.mxu0 0.0
  %1652 = vmatprep.subr.mxu0 0.0
  %1653 = vmatpush1.msra.mxu0 0.0
  %1654 = vmatprep.subr.mxu0 0.0
  %1655 = vmatpush1.msra.mxu0 0.0
  %1656 = vmatprep.subr.mxu0 0.0
  %1657 = vmatpush1.msra.mxu0 0.0
  %1658 = vmatprep.subr.mxu0 0.0
  %1659 = vmatpush1.msra.mxu0 0.0
  %1660 = vmatprep.subr.mxu0 0.0
  %1661 = vmatpush1.msra.mxu0 0.0
  %1662 = vmatprep.subr.mxu0 0.0
  %1663 = vmatpush1.msra.mxu0 0.0
  %1664 = vmatprep.subr.mxu0 0.0
  %1665 = vmatpush1.msra.mxu0 0.0
  %1666 = vmatprep.subr.mxu0 0.0
  %1667 = vmatpush1.msra.mxu0 0.0
  %1668 = vmatprep.subr.mxu0 0.0
  %1669 = vmatpush1.msra.mxu0 0.0
  %1670 = vmatprep.subr.mxu0 0.0
  %1671 = vmatpush1.msra.mxu0 0.0
  %1672 = vmatprep.subr.mxu0 0.0
  %1673 = vmatpush1.msra.mxu0 0.0
  %1674 = vmatprep.subr.mxu0 0.0
  %1675 = vmatpush1.msra.mxu0 0.0
  %1676 = vmatprep.subr.mxu0 0.0
  %1677 = vmatpush1.msra.mxu0 0.0
  %1678 = vmatprep.subr.mxu0 0.0
  %1679 = vmatpush1.msra.mxu0 0.0
  %1680 = vmatprep.subr.mxu0 0.0
  %1681 = vmatpush1.msra.mxu0 0.0
  %1682 = vmatprep.subr.mxu0 0.0
  %1683 = vmatpush1.msra.mxu0 0.0
  %1684 = vmatprep.mubr.f32.mxu0 0.0
  %1685 = vmatmul.mubr.f32.gmra.mrb[0].mxu0 %v1618
  %v1686 = vpop.f32.mrb[0].mxu0
  %v1687 = vadd.f32 %v56, %v1686
  %v1688 = vpop.f32.mrb[0].mxu0
  %1689 = vdwg.mxu0
  %v1690 = vadd.f32 %v1536, %v1687
  %v1691 = vxor.u32 %v1690, 2147483648
  %v1692 = vmul.f32 %v1691, 1.442695
  %v1693 = vpow.pop %v1692
  %v1694 = vadd.f32 %v1693, 1.0
  %v1695 = vrcp.pop %v1694
  %v1696 = vmul.f32 1.0, %v1695
  %v1697 = vmul.f32 %v1696, 2.0
  %v1698 = vsub.f32 %v1697, 1.0
  %v1699 = vmul.f32 %v1696, %v1487
  %1701 = vrot.lane.b32.xlu0 %v1698, 64
  %v1702 = vpop.permute.xlu0 %1701
  %v1704 = vmul.f32 %v1696, %v1702
  %1706 = vrot.lane.b32.xlu0 %v1704, 32
  %v1707 = vpop.permute.xlu0 %1706
  %v1709 = vadd.f32 %v1699, %v1707
  %v1710 = vtanh.pop %v1709
  %1712 = vrot.lane.b32.xlu0 %v1710, 64
  %v1713 = vpop.permute.xlu0 %1712
  %v1715 = vmul.f32 %v1696, %v1713
  %v1716 = vpack.c.bf16 %v1715, %v1715
  %1718 = vrot.lane.b32.xlu0 %v1716, 32
  %v1719 = vpop.permute.xlu0 %1718
  %v1721 = vsel %vm169, %v1719, 0
  %1723 = vmatprep.subr.bf16.mxu0 %v41
  %1724 = vmatpush1.bf16.msra.mxu0 %v40
  %1725 = vmatprep.subr.bf16.mxu0 %v43
  %1726 = vmatpush1.bf16.msra.mxu0 %v42
  %1727 = vmatprep.subr.bf16.mxu0 0
  %1728 = vmatpush1.bf16.msra.mxu0 0
  %1729 = vmatprep.subr.bf16.mxu0 0
  %1730 = vmatpush1.bf16.msra.mxu0 0
  %1731 = vmatprep.subr.bf16.mxu0 0
  %1732 = vmatpush1.bf16.msra.mxu0 0
  %1733 = vmatprep.subr.bf16.mxu0 0
  %1734 = vmatpush1.bf16.msra.mxu0 0
  %1735 = vmatprep.subr.bf16.mxu0 0
  %1736 = vmatpush1.bf16.msra.mxu0 0
  %1737 = vmatprep.subr.bf16.mxu0 0
  %1738 = vmatpush1.bf16.msra.mxu0 0
  %1739 = vmatprep.subr.bf16.mxu0 0
  %1740 = vmatpush1.bf16.msra.mxu0 0
  %1741 = vmatprep.subr.bf16.mxu0 0
  %1742 = vmatpush1.bf16.msra.mxu0 0
  %1743 = vmatprep.subr.bf16.mxu0 0
  %1744 = vmatpush1.bf16.msra.mxu0 0
  %1745 = vmatprep.subr.bf16.mxu0 0
  %1746 = vmatpush1.bf16.msra.mxu0 0
  %1747 = vmatprep.subr.bf16.mxu0 0
  %1748 = vmatpush1.bf16.msra.mxu0 0
  %1749 = vmatprep.subr.bf16.mxu0 0
  %1750 = vmatpush1.bf16.msra.mxu0 0
  %1751 = vmatprep.subr.bf16.mxu0 0
  %1752 = vmatpush1.bf16.msra.mxu0 0
  %1753 = vmatprep.subr.bf16.mxu0 0
  %1754 = vmatpush1.bf16.msra.mxu0 0
  %1755 = vmatprep.mubr.bf16.mxu0 0
  %1756 = vmatmul.mubr.bf16.gmra.mrb[0].mxu0 %v1721
  %v1757 = vpop.f32.mrb[0].mxu0
  %v1758 = vpop.f32.mrb[0].mxu0
  %v1759 = vadd.f32 0.0, %v1758
  %v1760 = vpop.f32.mrb[0].mxu0
  %v1761 = vpop.f32.mrb[0].mxu0
  %1762 = vdwg.mxu0
  %v1763 = vpack.c.bf16 %v1615, %v1615
  %1765 = vrot.lane.b32.xlu0 %v1763, 32
  %v1766 = vpop.permute.xlu0 %1765
  %v1768 = vsel %vm169, %v1766, 0
  %1770 = vmatprep.subr.bf16.mxu0 0
  %1771 = vmatpush1.bf16.msra.mxu0 %v48
  %1772 = vmatprep.subr.bf16.mxu0 0
  %1773 = vmatpush1.bf16.msra.mxu0 %v49
  %1774 = vmatprep.subr.bf16.mxu0 0
  %1775 = vmatpush1.bf16.msra.mxu0 0
  %1776 = vmatprep.subr.bf16.mxu0 0
  %1777 = vmatpush1.bf16.msra.mxu0 0
  %1778 = vmatprep.subr.bf16.mxu0 0
  %1779 = vmatpush1.bf16.msra.mxu0 0
  %1780 = vmatprep.subr.bf16.mxu0 0
  %1781 = vmatpush1.bf16.msra.mxu0 0
  %1782 = vmatprep.subr.bf16.mxu0 0
  %1783 = vmatpush1.bf16.msra.mxu0 0
  %1784 = vmatprep.subr.bf16.mxu0 0
  %1785 = vmatpush1.bf16.msra.mxu0 0
  %1786 = vmatprep.subr.bf16.mxu0 0
  %1787 = vmatpush1.bf16.msra.mxu0 0
  %1788 = vmatprep.subr.bf16.mxu0 0
  %1789 = vmatpush1.bf16.msra.mxu0 0
  %1790 = vmatprep.subr.bf16.mxu0 0
  %1791 = vmatpush1.bf16.msra.mxu0 0
  %1792 = vmatprep.subr.bf16.mxu0 0
  %1793 = vmatpush1.bf16.msra.mxu0 0
  %1794 = vmatprep.subr.bf16.mxu0 0
  %1795 = vmatpush1.bf16.msra.mxu0 0
  %1796 = vmatprep.subr.bf16.mxu0 0
  %1797 = vmatpush1.bf16.msra.mxu0 0
  %1798 = vmatprep.subr.bf16.mxu0 0
  %1799 = vmatpush1.bf16.msra.mxu0 0
  %1800 = vmatprep.subr.bf16.mxu0 0
  %1801 = vmatpush1.bf16.msra.mxu0 0
  %1802 = vmatprep.mubr.bf16.mxu0 0
  %1803 = vmatmul.mubr.bf16.gmra.mrb[0].mxu0 %v1768
  %v1804 = vpop.f32.mrb[0].mxu0
  %v1805 = vadd.f32 0.0, %v1804
  %v1806 = vpop.f32.mrb[0].mxu0
  %v1807 = vpop.f32.mrb[0].mxu0
  %v1808 = vpop.f32.mrb[0].mxu0
  %1809 = vdwg.mxu0
  %v1810 = vadd.f32 %v1759, %v1805
  %v1811 = vadd.f32 %v1810, %v63
  %v1812 = vxor.u32 %v1811, 2147483648
  %v1813 = vmul.f32 %v1812, 1.442695
  %v1814 = vpow.pop %v1813
  %v1815 = vadd.f32 %v1814, 1.0
  %v1816 = vrcp.pop %v1815
  %v1817 = vmul.f32 1.0, %v1816
  %v1818 = vmul.f32 %v1817, 2.0
  %v1819 = vsub.f32 %v1818, 1.0
  %v1820 = vmul.f32 %v1817, %v1609
  %1822 = vrot.lane.b32.xlu0 %v1819, 64
  %v1823 = vpop.permute.xlu0 %1822
  %v1825 = vmul.f32 %v1817, %v1823
  %1827 = vrot.lane.b32.xlu0 %v1825, 32
  %v1828 = vpop.permute.xlu0 %1827
  %v1830 = vadd.f32 %v1820, %v1828
  %v1831 = vtanh.pop %v1830
  %1833 = vrot.lane.b32.xlu0 %v1831, 64
  %v1834 = vpop.permute.xlu0 %1833
  %v1836 = vmul.f32 %v1817, %v1834
  %v1837 = vld [vmem:[%s6] sm:$0x1]
  %v1839 = vlaneseq
  %v1840 = vshrl.u32 %v1839, 7
  %v1841 = vsub.s32 0, %v1840
  %v1842 = vrot.slane %v1837, %v1841
  %1843 = vrot.lane.b32.xlu0 %v1842, 96
  %v1844 = vpop.permute.xlu0 %1843
  %v1846 = vmul.f32 %v1836, %v1844
  %1848 = vrot.lane.b32.xlu0 %v1846, 32
  %v1849 = vpop.permute.xlu0 %1848
  %v1851 = vsel %vm169, %v1849, 0.0
  %1852 = vadd.xlane.f32.xlu0 %v1851
  %v1853 = vpop.xlane.xlu0 %1852
  %v1854 = vld [vmem:[#allocation2] sm:$0x1]
  %v1856 = vlaneseq
  %v1857 = vshrl.u32 %v1856, 7
  %v1858 = vsub.s32 0, %v1857
  %v1859 = vrot.slane %v1854, %v1858
  %v1861 = vadd.f32 %v1853, %v1859
  %vm1862 = vcmask 7168
  %1863 = vst.msk [vmem:[%s8] sm:$0xff] %vm1862, %v1861
  // Predicated region
  $region34: #{lstm_model_forward.1} parent=0 // pred_check
    _
  $region35: #{lstm_model_forward.1} parent=0 // pred_check_branch
    %1865 = sbr.rel (0) target = $region37
  $region36: #{lstm_model_forward.1} parent=0 // pred_region
    _
  $region37: #{lstm_model_forward.1} parent=0 // pred_fallthru
    _
  // Predicated region
  $region38: #{lstm_model_forward.1} parent=0 // pred_check
    _
  $region39: #{lstm_model_forward.1} parent=0 // pred_check_branch
    %1867 = sbr.rel (0) target = $region41
  $region40: #{lstm_model_forward.1} parent=0 // pred_region
    _
  $region41: #{lstm_model_forward.1} parent=0 // pred_fallthru
    _

</llo_original>
